<compile_context>
chip_gen: v7x
topology: tpu7x:2x2x1
jax: 0.10.0
libtpu: 0.0.40
codegen_flags: <defaults>
</compile_context>

<pallas_src>
import functools
import math

import jax
import jax.numpy as jnp
from jax.experimental import pallas as pl
from jax.experimental.pallas import tpu as pltpu

GROWTH = 32
BN_SIZE = 4
BLOCK_CONFIG = (6, 12, 24, 16)
NUM_INIT = 64
NUM_CLASSES = 19
BN_EPS = 1e-5

_ACT_DTYPE = jnp.bfloat16
_VMEM_LIMIT = 32 * 1024 * 1024


# ----------------------------------------------------------------------------
# helpers
# ----------------------------------------------------------------------------
def _round_up(x, m):
    return (x + m - 1) // m * m


def _pick_tile(n, cands=(256, 128, 64, 32, 16, 8)):
    for t in cands:
        if n % t == 0:
            return t
    return n  # fall back to a full-extent block (always legal)


# ----------------------------------------------------------------------------
# Pallas kernels
# ----------------------------------------------------------------------------
def _mm_kgrid_kernel(a_ref, w_ref, is_ref, ib_ref, os_ref, ob_ref, o_ref, acc_ref,
                     *, in_relu, out_relu):
    """Tiled matmul with K-reduction grid axis, fused per-K-channel input affine(+ReLU)
    prologue and per-N-channel output affine(+ReLU) epilogue.  bf16 MXU, f32 acc."""
    k = pl.program_id(2)

    @pl.when(k == 0)
    def _():
        acc_ref[...] = jnp.zeros_like(acc_ref)

    a = a_ref[...].astype(jnp.float32) * is_ref[...] + ib_ref[...]
    if in_relu:
        a = jnp.maximum(a, 0.0)
    acc_ref[...] += jnp.dot(a.astype(jnp.bfloat16), w_ref[...],
                            preferred_element_type=jnp.float32)

    @pl.when(k == pl.num_programs(2) - 1)
    def _():
        y = acc_ref[...] * os_ref[...] + ob_ref[...]
        if out_relu:
            y = jnp.maximum(y, 0.0)
        o_ref[...] = y.astype(o_ref.dtype)


def _mm_chunked_kernel(*refs, widths, in_relu, out_relu):
    """Matmul whose A operand is a list of channel chunks (dense-block concat layout).
    Per-chunk input affine(+ReLU) prologue, output affine(+ReLU) epilogue."""
    n = len(widths)
    a_refs = refs[0:n]
    is_refs = refs[n:2 * n]
    ib_refs = refs[2 * n:3 * n]
    w_ref, os_ref, ob_ref, o_ref = refs[3 * n:]

    acc = None
    off = 0
    for c, wd in enumerate(widths):
        a = a_refs[c][...].astype(jnp.float32) * is_refs[c][...] + ib_refs[c][...]
        if in_relu:
            a = jnp.maximum(a, 0.0)
        part = jnp.dot(a.astype(jnp.bfloat16), w_ref[off:off + wd, :],
                       preferred_element_type=jnp.float32)
        acc = part if acc is None else acc + part
        off += wd

    y = acc * os_ref[...] + ob_ref[...]
    if out_relu:
        y = jnp.maximum(y, 0.0)
    o_ref[...] = y.astype(o_ref.dtype)


def _pool_kernel(x_ref, is_ref, ib_ref, o_ref, *, op, in_relu, inv_t):
    """Window reduce over the leading (tap) axis with optional fused affine+ReLU."""
    x = x_ref[...].astype(jnp.float32) * is_ref[...] + ib_ref[...]
    if in_relu:
        x = jnp.maximum(x, 0.0)
    if op == "max":
        o_ref[...] = jnp.max(x, axis=0).astype(o_ref.dtype)
    else:
        o_ref[...] = (jnp.sum(x, axis=0) * inv_t).astype(o_ref.dtype)


# ----------------------------------------------------------------------------
# Pallas wrappers
# ----------------------------------------------------------------------------
def fused_matmul(a, w, in_scale=None, in_bias=None, in_relu=False,
                 out_scale=None, out_bias=None, out_relu=False,
                 out_dtype=_ACT_DTYPE):
    """(M, K) @ (K, N) with fused input / output affine(+ReLU). K must be a 128-mult."""
    M, K = a.shape
    Kw, N = w.shape
    assert Kw == K and K % 128 == 0
    if in_scale is None:
        in_scale = jnp.ones((K,), jnp.float32)
    if in_bias is None:
        in_bias = jnp.zeros((K,), jnp.float32)
    if out_scale is None:
        out_scale = jnp.ones((N,), jnp.float32)
    if out_bias is None:
        out_bias = jnp.zeros((N,), jnp.float32)

    tm = _pick_tile(M)
    tn = 128 if N % 128 == 0 else N
    if K <= 512:
        tk = K
    else:
        tk = next(t for t in (512, 384, 256, 128) if K % t == 0)
    grid = (M // tm, N // tn, K // tk)

    kern = functools.partial(_mm_kgrid_kernel, in_relu=in_relu, out_relu=out_relu)
    return pl.pallas_call(
        kern,
        out_shape=jax.ShapeDtypeStruct((M, N), out_dtype),
        grid=grid,
        in_specs=[
            pl.BlockSpec((tm, tk), lambda i, j, k: (i, k)),
            pl.BlockSpec((tk, tn), lambda i, j, k: (k, j)),
            pl.BlockSpec((1, tk), lambda i, j, k: (0, k)),
            pl.BlockSpec((1, tk), lambda i, j, k: (0, k)),
            pl.BlockSpec((1, tn), lambda i, j, k: (0, j)),
            pl.BlockSpec((1, tn), lambda i, j, k: (0, j)),
        ],
        out_specs=pl.BlockSpec((tm, tn), lambda i, j, k: (i, j)),
        scratch_shapes=[pltpu.VMEM((tm, tn), jnp.float32)],
        compiler_params=pltpu.CompilerParams(
            dimension_semantics=("parallel", "parallel", "arbitrary"),
            vmem_limit_bytes=_VMEM_LIMIT),
    )(a, w,
      in_scale.reshape(1, K).astype(jnp.float32),
      in_bias.reshape(1, K).astype(jnp.float32),
      out_scale.reshape(1, N).astype(jnp.float32),
      out_bias.reshape(1, N).astype(jnp.float32))


def fused_matmul_chunked(a_chunks, w, in_scale, in_bias, in_relu=False,
                         out_scale=None, out_bias=None, out_relu=False,
                         out_dtype=_ACT_DTYPE):
    """Matmul over a channel-chunk list (dense-block concat without materializing it)."""
    widths = tuple(int(c.shape[1]) for c in a_chunks)
    M = a_chunks[0].shape[0]
    K = int(sum(widths))
    Kw, N = w.shape
    assert Kw == K
    if out_scale is None:
        out_scale = jnp.ones((N,), jnp.float32)
    if out_bias is None:
        out_bias = jnp.zeros((N,), jnp.float32)

    is_list, ib_list = [], []
    off = 0
    for wd in widths:
        is_list.append(in_scale[off:off + wd].reshape(1, wd).astype(jnp.float32))
        ib_list.append(in_bias[off:off + wd].reshape(1, wd).astype(jnp.float32))
        off += wd

    tm = _pick_tile(M)
    tn = 128 if N % 128 == 0 else N
    grid = (M // tm, N // tn)

    in_specs = (
        [pl.BlockSpec((tm, wd), lambda i, j: (i, 0)) for wd in widths]
        + [pl.BlockSpec((1, wd), lambda i, j: (0, 0)) for wd in widths]
        + [pl.BlockSpec((1, wd), lambda i, j: (0, 0)) for wd in widths]
        + [pl.BlockSpec((K, tn), lambda i, j: (0, j)),
           pl.BlockSpec((1, tn), lambda i, j: (0, j)),
           pl.BlockSpec((1, tn), lambda i, j: (0, j))]
    )
    kern = functools.partial(_mm_chunked_kernel, widths=widths,
                             in_relu=in_relu, out_relu=out_relu)
    return pl.pallas_call(
        kern,
        out_shape=jax.ShapeDtypeStruct((M, N), out_dtype),
        grid=grid,
        in_specs=in_specs,
        out_specs=pl.BlockSpec((tm, tn), lambda i, j: (i, j)),
        compiler_params=pltpu.CompilerParams(
            dimension_semantics=("parallel", "parallel"),
            vmem_limit_bytes=_VMEM_LIMIT),
    )(*a_chunks, *is_list, *ib_list, w,
      out_scale.reshape(1, N).astype(jnp.float32),
      out_bias.reshape(1, N).astype(jnp.float32))


def pool_windows(stacked, op, in_scale=None, in_bias=None, in_relu=False,
                 out_dtype=_ACT_DTYPE):
    """Reduce (T, M, C) over T (max / mean), tiled over M, optional affine+ReLU prologue."""
    T, M, C = stacked.shape
    if in_scale is None:
        in_scale = jnp.ones((C,), jnp.float32)
    if in_bias is None:
        in_bias = jnp.zeros((C,), jnp.float32)
    tm = _pick_tile(M)
    grid = (M // tm,)
    kern = functools.partial(_pool_kernel, op=op, in_relu=in_relu, inv_t=1.0 / T)
    return pl.pallas_call(
        kern,
        out_shape=jax.ShapeDtypeStruct((M, C), out_dtype),
        grid=grid,
        in_specs=[pl.BlockSpec((T, tm, C), lambda i: (0, i, 0)),
                  pl.BlockSpec((1, 1, C), lambda i: (0, 0, 0)),
                  pl.BlockSpec((1, 1, C), lambda i: (0, 0, 0))],
        out_specs=pl.BlockSpec((tm, C), lambda i: (i, 0)),
        compiler_params=pltpu.CompilerParams(
            dimension_semantics=("parallel",),
            vmem_limit_bytes=_VMEM_LIMIT),
    )(stacked,
      in_scale.reshape(1, 1, C).astype(jnp.float32),
      in_bias.reshape(1, 1, C).astype(jnp.float32))


# ----------------------------------------------------------------------------
# NN building blocks (JAX glue around the Pallas kernels)
# ----------------------------------------------------------------------------
def conv0_block(x_nhwc, p):
    """7x7 stride-2 conv (6->64) with norm0 + ReLU fused as the output epilogue."""
    N, H, W, Cin = x_nhwc.shape
    kh = kw = 7
    s, pd = 2, 3
    xp = jnp.pad(x_nhwc, ((0, 0), (pd, pd), (pd, pd), (0, 0)))
    Ho = (H + 2 * pd - kh) // s + 1
    Wo = (W + 2 * pd - kw) // s + 1
    taps = [xp[:, i:i + s * (Ho - 1) + 1:s, j:j + s * (Wo - 1) + 1:s, :]
            for i in range(kh) for j in range(kw)]
    # TODO(synk): im2col materializes the input 49x; a manual-DMA tap kernel would avoid it.
    A = jnp.concatenate(taps, axis=-1).reshape(N * Ho * Wo, kh * kw * Cin)
    Kp = _round_up(kh * kw * Cin, 128)
    A = jnp.pad(A, ((0, 0), (0, Kp - kh * kw * Cin)))
    y = fused_matmul(A, p["conv0_w"],
                     out_scale=p["norm0_scale"], out_bias=p["norm0_bias"],
                     out_relu=True)
    return y.reshape(N, Ho, Wo, NUM_INIT)


def conv3x3_matmul(y2d, w, N, H, W):
    """3x3 stride-1 pad-1 conv via 9-tap im2col + tiled matmul.
    y2d (N*H*W, C) is already post-BN2/ReLU so zero spatial padding is exact."""
    C = y2d.shape[1]
    y4 = y2d.reshape(N, H, W, C)
    yp = jnp.pad(y4, ((0, 0), (1, 1), (1, 1), (0, 0)))
    taps = [yp[:, i:i + H, j:j + W, :] for i in range(3) for j in range(3)]
    A = jnp.concatenate(taps, axis=-1).reshape(N * H * W, 9 * C)
    return fused_matmul(A, w)


def maxpool_3x3_s2_p1(x):
    """3x3 stride-2 pad-1 max pool.  Input is post-ReLU (>=0), so zero padding is exact."""
    N, H, W, C = x.shape
    xp = jnp.pad(x, ((0, 0), (1, 1), (1, 1), (0, 0)))
    Ho = (H + 2 - 3) // 2 + 1
    Wo = (W + 2 - 3) // 2 + 1
    wins = [xp[:, i:i + 2 * (Ho - 1) + 1:2, j:j + 2 * (Wo - 1) + 1:2, :]
            for i in range(3) for j in range(3)]
    stacked = jnp.stack(wins, axis=0).reshape(9, N * Ho * Wo, C)
    return pool_windows(stacked, "max").reshape(N, Ho, Wo, C)


def avgpool_2x2(x):
    N, H, W, C = x.shape
    Ho, Wo = H // 2, W // 2
    wins = [x[:, i:2 * Ho:2, j:2 * Wo:2, :] for i in range(2) for j in range(2)]
    stacked = jnp.stack(wins, axis=0).reshape(4, N * Ho * Wo, C)
    return pool_windows(stacked, "mean").reshape(N, Ho, Wo, C)


def global_avgpool_norm5(chunks, n5_scale, n5_bias, N, H, W):
    """Adaptive average pool with norm5 + ReLU fused as the per-chunk prologue."""
    pooled, off = [], 0
    for ch in chunks:
        wd = ch.shape[1]
        t = jnp.transpose(ch.reshape(N, H * W, wd), (1, 0, 2))      # (HW, N, wd)
        pooled.append(pool_windows(t, "mean",
                                   in_scale=n5_scale[off:off + wd],
                                   in_bias=n5_bias[off:off + wd],
                                   in_relu=True, out_dtype=jnp.float32))
        off += wd
    return jnp.concatenate(pooled, axis=-1)                          # (N, K)


def dense_block_forward(x0_flat, layers, N, H, W):
    """DenseNet block.  Features are kept as a list of channel chunks:
    [block input (c0 wide)] + 128-wide chunks, each chunk covering 4 layers' outputs.
    This replaces the per-layer rewrite of the full (N,H,W,cmax) slab."""
    M = x0_flat.shape[0]
    chunks = [x0_flat]
    cur_group = None
    for l, lp in enumerate(layers):
        if l % 4 == 0:
            if cur_group is not None:
                chunks.append(cur_group)
            cur_group = jnp.zeros((M, 128), _ACT_DTYPE)
        a_chunks = chunks + [cur_group]
        # 1x1 bottleneck: norm1+ReLU fused as input prologue, norm2+ReLU fused as
        # output epilogue (its only consumer is conv2).
        bott = fused_matmul_chunked(a_chunks, lp["w1"],
                                    lp["bn1_scale"], lp["bn1_bias"], in_relu=True,
                                    out_scale=lp["bn2_scale"], out_bias=lp["bn2_bias"],
                                    out_relu=True)
        new = conv3x3_matmul(bott, lp["w2"], N, H, W)               # (M, 32) bf16
        cur_group = jax.lax.dynamic_update_slice(cur_group, new, (0, (l % 4) * GROWTH))
    chunks.append(cur_group)
    return chunks


# ----------------------------------------------------------------------------
# Parameters (deterministic synthetic init; same shapes as the PyTorch module)
# ----------------------------------------------------------------------------
class _KeyGen:
    def __init__(self, seed=0):
        self._key = jax.random.PRNGKey(seed)
        self._n = 0

    def __call__(self):
        self._n += 1
        return jax.random.fold_in(self._key, self._n)


def _bn_affine(kg, c):
    gamma = 1.0 + 0.1 * jax.random.normal(kg(), (c,), jnp.float32)
    beta = 0.1 * jax.random.normal(kg(), (c,), jnp.float32)
    run_mean = 0.1 * jax.random.normal(kg(), (c,), jnp.float32)
    run_var = jnp.ones((c,), jnp.float32)
    scale = gamma / jnp.sqrt(run_var + BN_EPS)
    bias = beta - run_mean * scale
    return scale, bias


def _conv_w(kg, o, c, kh, kw):
    fan_in = c * kh * kw
    return jax.random.normal(kg(), (o, c, kh, kw), jnp.float32) * math.sqrt(2.0 / fan_in)


def init_params():
    kg = _KeyGen(0)
    p = {}
    # conv0: 3-channel weights duplicated into channels 3:6 (as in the module __init__),
    # stored once in im2col matmul layout, padded to a 128-multiple K, bf16.
    w3 = _conv_w(kg, NUM_INIT, 3, 7, 7)
    w6 = jnp.concatenate([w3, w3], axis=1)                              # (64, 6, 7, 7)
    k0 = 7 * 7 * 6
    wm = jnp.transpose(w6, (2, 3, 1, 0)).reshape(k0, NUM_INIT)
    p["conv0_w"] = jnp.pad(wm, ((0, _round_up(k0, 128) - k0), (0, 0))).astype(_ACT_DTYPE)
    p["norm0_scale"], p["norm0_bias"] = _bn_affine(kg, NUM_INIT)

    blocks = []
    c = NUM_INIT
    for bi, L in enumerate(BLOCK_CONFIG):
        c0 = c
        layers = []
        for l in range(L):
            cur = c0 + l * GROWTH
            kb = c0 + 128 * (l // 4 + 1)          # 128-bucketed K of this layer's layout
            s1, b1 = _bn_affine(kg, cur)
            w1 = _conv_w(kg, BN_SIZE * GROWTH, cur, 1, 1)[:, :, 0, 0]   # (128, cur)
            s2, b2 = _bn_affine(kg, BN_SIZE * GROWTH)
            w2 = _conv_w(kg, GROWTH, BN_SIZE * GROWTH, 3, 3)            # (32, 128, 3, 3)
            layers.append(dict(
                bn1_scale=jnp.pad(s1, (0, kb - cur)),
                bn1_bias=jnp.pad(b1, (0, kb - cur)),
                w1=jnp.pad(w1.T, ((0, kb - cur), (0, 0))).astype(_ACT_DTYPE),   # (kb, 128)
                bn2_scale=s2, bn2_bias=b2,
                w2=jnp.transpose(w2, (2, 3, 1, 0)).reshape(
                    9 * BN_SIZE * GROWTH, GROWTH).astype(_ACT_DTYPE)))          # (1152, 32)
        bdict = dict(layers=layers)
        c = c0 + L * GROWTH
        kb_final = c0 + 128 * ((L * GROWTH + 127) // 128)
        if bi != len(BLOCK_CONFIG) - 1:
            ts, tb = _bn_affine(kg, c)
            tw = _conv_w(kg, c // 2, c, 1, 1)[:, :, 0, 0]                       # (c/2, c)
            bdict["trans"] = dict(
                bn_scale=jnp.pad(ts, (0, kb_final - c)),
                bn_bias=jnp.pad(tb, (0, kb_final - c)),
                w=jnp.pad(tw.T, ((0, kb_final - c), (0, 0))).astype(_ACT_DTYPE))
            c = c // 2
        blocks.append(bdict)
    p["blocks"] = blocks

    # norm5 + classifier head (c == 1024 == final chunk-layout width for DenseNet-121)
    p["norm5_scale"], p["norm5_bias"] = _bn_affine(kg, c)
    p["cls_bn_scale"], p["cls_bn_bias"] = _bn_affine(kg, c)
    cls_w = jax.random.normal(kg(), (NUM_CLASSES, c), jnp.float32) * math.sqrt(1.0 / c)
    p["cls_w"] = cls_w.T.astype(_ACT_DTYPE)                                     # (1024, 19)
    p["cls_b"] = jnp.zeros((NUM_CLASSES,), jnp.float32)
    return p


# ----------------------------------------------------------------------------
# Forward pass (matches torchvision DenseNet-121 forward, inference mode)
# ----------------------------------------------------------------------------
def densenet_forward(x_nchw, p):
    x = jnp.transpose(x_nchw, (0, 2, 3, 1)).astype(_ACT_DTYPE)      # NCHW -> NHWC, bf16
    y = conv0_block(x, p)                                           # conv0 + norm0 + relu
    y = maxpool_3x3_s2_p1(y)
    N, H, W, C = y.shape
    x0 = y.reshape(N * H * W, C)

    chunks = None
    for bp in p["blocks"]:
        chunks = dense_block_forward(x0, bp["layers"], N, H, W)
        if "trans" in bp:
            tp = bp["trans"]
            # transition: BN+ReLU fused as input prologue of the 1x1 conv
            y = fused_matmul_chunked(chunks, tp["w"], tp["bn_scale"], tp["bn_bias"],
                                     in_relu=True)
            C2 = y.shape[1]
            y = avgpool_2x2(y.reshape(N, H, W, C2))
            N, H, W, C = y.shape
            x0 = y.reshape(N * H * W, C)

    # F.relu(norm5(features)) + adaptive_avg_pool2d fused into one pooling pass per chunk
    pooled = global_avgpool_norm5(chunks, p["norm5_scale"], p["norm5_bias"], N, H, W)

    # classifier: BatchNorm1d fused as prologue, Linear bias folded into the epilogue.
    # TODO(synk): Dropout(p=0.2) is identity at inference; training-mode dropout and
    # batch-statistics BatchNorm are not implemented.
    logits = fused_matmul(pooled, p["cls_w"],
                          in_scale=p["cls_bn_scale"], in_bias=p["cls_bn_bias"],
                          out_bias=p["cls_b"], out_dtype=jnp.float32)
    return logits


# ----------------------------------------------------------------------------
if __name__ == "__main__":
    key = jax.random.PRNGKey(0)
    # batch=2, channels=6 (RGB image + 3-channel mask), spatial=32 (min for DenseNet-121)
    x = jax.random.normal(key, (2, 6, 32, 32), jnp.float32)          # PyTorch NCHW layout
    params = init_params()
    out = densenet_forward(x, params)
    out = jax.block_until_ready(out)
    assert out.shape == (2, NUM_CLASSES), out.shape
    assert bool(jnp.all(jnp.isfinite(out)))
    print("KERNEL_OK")
</pallas_src>

<mosaic_0001>
module attributes {stable_mosaic.version = 11 : i64} {
  func.func @_mm_kgrid_kernel(%arg0: i32, %arg1: i32, %arg2: i32, %arg3: memref<256x384xbf16, #tpu.memory_space<vmem>>, %arg4: memref<384x64xbf16, #tpu.memory_space<vmem>>, %arg5: memref<1x384xf32, #tpu.memory_space<vmem>>, %arg6: memref<1x384xf32, #tpu.memory_space<vmem>>, %arg7: memref<1x64xf32, #tpu.memory_space<vmem>>, %arg8: memref<1x64xf32, #tpu.memory_space<vmem>>, %arg9: memref<256x64xbf16, #tpu.memory_space<vmem>>, %arg10: memref<256x64xf32, #tpu.memory_space<vmem>>) attributes {dimension_semantics = [#tpu.dimension_semantics<parallel>, #tpu.dimension_semantics<parallel>, #tpu.dimension_semantics<arbitrary>], iteration_bounds = array<i64: 2, 1, 1>, scalar_prefetch = 0 : i64, scratch_operands = 1 : i64, tpu.core_type = #tpu.core_type<tc>, window_params = [{transform_indices = @transform_0, window_bounds = array<i64: 256, 384>}, {transform_indices = @transform_1, window_bounds = array<i64: 384, 64>}, {transform_indices = @transform_2, window_bounds = array<i64: 1, 384>}, {transform_indices = @transform_3, window_bounds = array<i64: 1, 384>}, {transform_indices = @transform_4, window_bounds = array<i64: 1, 64>}, {transform_indices = @transform_5, window_bounds = array<i64: 1, 64>}, {transform_indices = @transform_6, window_bounds = array<i64: 256, 64>}]} {
    %c0_i32 = arith.constant 0 : i32
    %0 = arith.cmpi eq, %arg2, %c0_i32 : i32
    %1 = arith.extui %0 : i1 to i32
    %c0_i32_0 = arith.constant 0 : i32
    %2 = arith.cmpi ne, %1, %c0_i32_0 : i32
    scf.if %2 {
      %cst_14 = arith.constant 0.000000e+00 : f32
      %20 = vector.broadcast %cst_14 : f32 to vector<256x64xf32>
      %c0_15 = arith.constant 0 : index
      %c0_16 = arith.constant 0 : index
      %21 = vector.load %arg10[%c0_15, %c0_16] : memref<256x64xf32, #tpu.memory_space<vmem>>, vector<256x64xf32>
      tpu.vector_store %arg10[%c0_15, %c0_16], %20 {strides = array<i32>} : memref<256x64xf32, #tpu.memory_space<vmem>>, vector<256x64xf32>,
    } else {
    }
    %c0 = arith.constant 0 : index
    %c0_1 = arith.constant 0 : index
    %3 = vector.load %arg3[%c0, %c0_1] : memref<256x384xbf16, #tpu.memory_space<vmem>>, vector<256x384xbf16>
    %4 = arith.extf %3 : vector<256x384xbf16> to vector<256x384xf32>
    %c0_2 = arith.constant 0 : index
    %c0_3 = arith.constant 0 : index
    %5 = vector.load %arg5[%c0_2, %c0_3] : memref<1x384xf32, #tpu.memory_space<vmem>>, vector<1x384xf32>
    %6 = vector.broadcast %5 : vector<1x384xf32> to vector<256x384xf32>
    %7 = arith.mulf %4, %6 : vector<256x384xf32>
    %c0_4 = arith.constant 0 : index
    %c0_5 = arith.constant 0 : index
    %8 = vector.load %arg6[%c0_4, %c0_5] : memref<1x384xf32, #tpu.memory_space<vmem>>, vector<1x384xf32>
    %9 = vector.broadcast %8 : vector<1x384xf32> to vector<256x384xf32>
    %10 = arith.addf %7, %9 : vector<256x384xf32>
    %c0_6 = arith.constant 0 : index
    %c0_7 = arith.constant 0 : index
    %11 = vector.load %arg10[%c0_6, %c0_7] : memref<256x64xf32, #tpu.memory_space<vmem>>, vector<256x64xf32>
    %12 = arith.truncf %10 : vector<256x384xf32> to vector<256x384xbf16>
    %c0_8 = arith.constant 0 : index
    %c0_9 = arith.constant 0 : index
    %13 = vector.load %arg4[%c0_8, %c0_9] : memref<384x64xbf16, #tpu.memory_space<vmem>>, vector<384x64xbf16>
    %cst = arith.constant dense<0.000000e+00> : vector<256x64xf32>
    %14 = tpu.matmul %12, %13, %cst {dimension_numbers = #tpu.dot_dimension_numbers<[1], [0], [0], [1], [0, 0, 1, 1], [], []>} : vector<256x384xbf16>, vector<384x64xbf16>, vector<256x64xf32> -> vector<256x64xf32>
    %15 = arith.addf %11, %14 : vector<256x64xf32>
    %c0_10 = arith.constant 0 : index
    %c0_11 = arith.constant 0 : index
    %16 = vector.load %arg10[%c0_10, %c0_11] : memref<256x64xf32, #tpu.memory_space<vmem>>, vector<256x64xf32>
    tpu.vector_store %arg10[%c0_10, %c0_11], %15 {strides = array<i32>} : memref<256x64xf32, #tpu.memory_space<vmem>>, vector<256x64xf32>,
    %c0_i32_12 = arith.constant 0 : i32
    %17 = arith.cmpi eq, %arg2, %c0_i32_12 : i32
    %18 = arith.extui %17 : i1 to i32
    %c0_i32_13 = arith.constant 0 : i32
    %19 = arith.cmpi ne, %18, %c0_i32_13 : i32
    scf.if %19 {
      %c0_14 = arith.constant 0 : index
      %c0_15 = arith.constant 0 : index
      %20 = vector.load %arg10[%c0_14, %c0_15] : memref<256x64xf32, #tpu.memory_space<vmem>>, vector<256x64xf32>
      %c0_16 = arith.constant 0 : index
      %c0_17 = arith.constant 0 : index
      %21 = vector.load %arg7[%c0_16, %c0_17] : memref<1x64xf32, #tpu.memory_space<vmem>>, vector<1x64xf32>
      %22 = vector.broadcast %21 : vector<1x64xf32> to vector<256x64xf32>
      %23 = arith.mulf %20, %22 : vector<256x64xf32>
      %c0_18 = arith.constant 0 : index
      %c0_19 = arith.constant 0 : index
      %24 = vector.load %arg8[%c0_18, %c0_19] : memref<1x64xf32, #tpu.memory_space<vmem>>, vector<1x64xf32>
      %25 = vector.broadcast %24 : vector<1x64xf32> to vector<256x64xf32>
      %26 = arith.addf %23, %25 : vector<256x64xf32>
      %cst_20 = arith.constant 0.000000e+00 : f32
      %27 = vector.broadcast %cst_20 : f32 to vector<256x64xf32>
      %28 = arith.maximumf %26, %27 : vector<256x64xf32>
      %29 = arith.truncf %28 : vector<256x64xf32> to vector<256x64xbf16>
      %c0_21 = arith.constant 0 : index
      %c0_22 = arith.constant 0 : index
      %30 = vector.load %arg9[%c0_21, %c0_22] : memref<256x64xbf16, #tpu.memory_space<vmem>>, vector<256x64xbf16>
      tpu.vector_store %arg9[%c0_21, %c0_22], %29 {strides = array<i32>} : memref<256x64xbf16, #tpu.memory_space<vmem>>, vector<256x64xbf16>,
    } else {
    }
    return
  }
  func.func @transform_0(%arg0: i32, %arg1: i32, %arg2: i32) -> (i32, i32) {
    %c0_i32 = arith.constant 0 : i32
    return %arg0, %arg2 : i32, i32
  }
  func.func @transform_1(%arg0: i32, %arg1: i32, %arg2: i32) -> (i32, i32) {
    %c0_i32 = arith.constant 0 : i32
    return %arg2, %arg1 : i32, i32
  }
  func.func @transform_2(%arg0: i32, %arg1: i32, %arg2: i32) -> (i32, i32) {
    %c0_i32 = arith.constant 0 : i32
    %c0_i32_0 = arith.constant 0 : i32
    return %c0_i32, %arg2 : i32, i32
  }
  func.func @transform_3(%arg0: i32, %arg1: i32, %arg2: i32) -> (i32, i32) {
    %c0_i32 = arith.constant 0 : i32
    %c0_i32_0 = arith.constant 0 : i32
    return %c0_i32, %arg2 : i32, i32
  }
  func.func @transform_4(%arg0: i32, %arg1: i32, %arg2: i32) -> (i32, i32) {
    %c0_i32 = arith.constant 0 : i32
    %c0_i32_0 = arith.constant 0 : i32
    return %c0_i32, %arg1 : i32, i32
  }
  func.func @transform_5(%arg0: i32, %arg1: i32, %arg2: i32) -> (i32, i32) {
    %c0_i32 = arith.constant 0 : i32
    %c0_i32_0 = arith.constant 0 : i32
    return %c0_i32, %arg1 : i32, i32
  }
  func.func @transform_6(%arg0: i32, %arg1: i32, %arg2: i32) -> (i32, i32) {
    %c0_i32 = arith.constant 0 : i32
    return %arg0, %arg1 : i32, i32
  }
}

</mosaic_0001>

<llo_original>
// kernel: tpu_custom_call.1
$region0: #{tpu_custom_call.1}
  #allocation0 [shape = 'u32[]', space=smem, size = 0x4, offset = 0x4, fixed_abs, tag = 'smem constant byte address 0x4 - core index']
  #allocation1 [shape = 'u32[144,128]{1,0:T(1,128)}', space=vmem, size = 0x12000, scoped, tag = 'internal scratch']
  #allocation2 [shape = 'f32[256,64]{1,0:T(8,128)}', space=vmem, size = 0x20000, scoped, tag = 'scratch operand']
  %s0 = inlined_call_operand.hbm [shape: bf16[512,384], index: 0, kind: input, shape index: {}]
  %s1 = inlined_call_operand.vmem [shape: bf16[384,64], index: 1, kind: input, shape index: {}]
  %s2 = inlined_call_operand.vmem [shape: f32[1,384], index: 2, kind: input, shape index: {}]
  %s3 = inlined_call_operand.vmem [shape: f32[1,384], index: 3, kind: input, shape index: {}]
  %s4 = inlined_call_operand.vmem [shape: f32[1,64], index: 4, kind: input, shape index: {}]
  %s5 = inlined_call_operand.vmem [shape: f32[1,64], index: 5, kind: input, shape index: {}]
  %s6 = inlined_call_operand.vmem [shape: bf16[512,64], index: 6, kind: output, shape index: {}]
  %s7 = sld [smem:[#allocation0]]
  $region69: #{tpu_custom_call.1} parent=0
    _
  %s9 = ssub.s32 1, %s7
  %s10 = scalar_select 0, %s9, %s7
  $region1: #{tpu_custom_call.1} parent=0
    #allocation3 [shape = 'u8[393216]{0}', space=vmem, size = 0x60000, scoped, tag = 'input window, operand 0']
    #allocation4 [shape = 's32[2]{0}', space=sflag, size = 0x8, scoped, tag = 'scoped memory for tpu_custom_call.1']
    %11 = vsyncpa [#allocation4], 0
    %s12 = scalar_lea.sflag [#allocation4], 1
    %13 = vsyncpa %s12, 0
    loop: start=0, step=1, limit=4
    $region2: #{tpu_custom_call.1} parent=1 // loop_pre_header
      _
    $region3: #{tpu_custom_call.1} parent=1 // loop_header
      %s15 = sphi 0, %s19
      %p16 = scmp.ge.s32.totalorder %s15, 4
      %s22 = sphi 0, %s41
      %s23 = sphi 0, %s37
      %s24 = sphi 0, %s33
      %s25 = sphi 0, %s22
      %s26 = sphi 0, %s23
      %s27 = sphi 0, %s24
      %s28 = sphi 0, %s25
      %s29 = sphi 0, %s26
      %s30 = sphi 0, %s27
      %s46 = sphi 0, %s48
      %s49 = sphi 0, %s46
      %s50 = sphi 0, %s49
      %s66 = sphi 0, %s50
      %s74 = sphi 0, %s76
      %s77 = sphi 0, %s74
      %s78 = sphi 0, %s77
      %s94 = sphi 0, %s78
      %s100 = sphi 0, %s102
      %s103 = sphi 0, %s100
      %s104 = sphi 0, %s103
      %s120 = sphi 0, %s104
      %s126 = sphi 0, %s128
      %s129 = sphi 0, %s126
      %s130 = sphi 0, %s129
      %s146 = sphi 0, %s130
      %s152 = sphi 0, %s154
      %s155 = sphi 0, %s152
      %s156 = sphi 0, %s155
      %s172 = sphi 0, %s156
      %s178 = sphi 0, %s180
      %s181 = sphi 0, %s178
      %s182 = sphi 0, %s181
      %s198 = sphi 0, %s182
      %s206 = sphi 0, %s208
      %s209 = sphi 0, %s206
      %s210 = sphi 0, %s209
      %s226 = sphi 0, %s210
    $region4: #{tpu_custom_call.1} parent=1 // loop_header_branch
      %18 = sbr.rel (%p16) target = $region8
    $region5: #{tpu_custom_call.1} parent=1 // loop_body
      %s20 = ssub.s32 %s15, 1
      %s21 = ssub.s32 %s15, 2
      %s31 = sadd.s32 1, %s24
      %p32 = scmp.ge.s32.totalorder %s31, 1
      %s33 = scalar_select %p32, 0, %s31
      %s34 = sadd.s32 1, %s23
      %s35 = scalar_select %p32, %s34, %s23
      %p36 = scmp.ge.s32.totalorder %s35, 1
      %s37 = scalar_select %p36, 0, %s35
      %s38 = sadd.s32 1, %s22
      %s39 = scalar_select %p36, %s38, %s22
      %p40 = scmp.ge.s32.totalorder %s39, 2
      %s41 = scalar_select %p40, 0, %s39
      %s42 = ssub.s32 %s22, %s41
      %s43 = ssub.s32 %s24, %s33
      %s44 = sor.u32 %s42, %s43
      %p45 = scmp.eq.s32.totalorder %s44, 0
      %s47 = sadd.s32 %s46, 1
      %s48 = scalar_select %p45, %s46, %s47
      %p51 = pneg %p45
      %p52 = scmp.eq.s32.totalorder %s15, 1
      %p53 = por %p51, %p52
      %p54 = scmp.ne.s32.totalorder %s46, %s49
      %p55 = scmp.eq.s32.totalorder %s15, 0
      %p56 = por %p54, %p55
      %p57 = scmp.ne.s32.totalorder %s46, %s49
      %p58 = scmp.eq.s32.totalorder %s20, 1
      %p59 = por %p57, %p58
      %p60 = scmp.ne.s32.totalorder %s49, %s50
      %p61 = scmp.eq.s32.totalorder %s20, 0
      %p62 = por %p60, %p61
      %p63 = scmp.ne.s32.totalorder %s49, %s50
      %p64 = scmp.eq.s32.totalorder %s21, 1
      %p65 = por %p63, %p64
      %p67 = scmp.ne.s32.totalorder %s50, %s66
      %p68 = scmp.eq.s32.totalorder %s21, 0
      %p69 = por %p67, %p68
      %s70 = ssub.s32 %s24, %s33
      %s71 = ssub.s32 %s23, %s37
      %s72 = sor.u32 %s70, %s71
      %p73 = scmp.eq.s32.totalorder %s72, 0
      %s75 = sadd.s32 %s74, 1
      %s76 = scalar_select %p73, %s74, %s75
      %p79 = pneg %p73
      %p80 = scmp.eq.s32.totalorder %s15, 1
      %p81 = por %p79, %p80
      %p82 = scmp.ne.s32.totalorder %s74, %s77
      %p83 = scmp.eq.s32.totalorder %s15, 0
      %p84 = por %p82, %p83
      %p85 = scmp.ne.s32.totalorder %s74, %s77
      %p86 = scmp.eq.s32.totalorder %s20, 1
      %p87 = por %p85, %p86
      %p88 = scmp.ne.s32.totalorder %s77, %s78
      %p89 = scmp.eq.s32.totalorder %s20, 0
      %p90 = por %p88, %p89
      %p91 = scmp.ne.s32.totalorder %s77, %s78
      %p92 = scmp.eq.s32.totalorder %s21, 1
      %p93 = por %p91, %p92
      %p95 = scmp.ne.s32.totalorder %s78, %s94
      %p96 = scmp.eq.s32.totalorder %s21, 0
      %p97 = por %p95, %p96
      %s98 = ssub.s32 %s24, %s33
      %p99 = scmp.eq.s32.totalorder %s98, 0
      %s101 = sadd.s32 %s100, 1
      %s102 = scalar_select %p99, %s100, %s101
      %p105 = pneg %p99
      %p106 = scmp.eq.s32.totalorder %s15, 1
      %p107 = por %p105, %p106
      %p108 = scmp.ne.s32.totalorder %s100, %s103
      %p109 = scmp.eq.s32.totalorder %s15, 0
      %p110 = por %p108, %p109
      %p111 = scmp.ne.s32.totalorder %s100, %s103
      %p112 = scmp.eq.s32.totalorder %s20, 1
      %p113 = por %p111, %p112
      %p114 = scmp.ne.s32.totalorder %s103, %s104
      %p115 = scmp.eq.s32.totalorder %s20, 0
      %p116 = por %p114, %p115
      %p117 = scmp.ne.s32.totalorder %s103, %s104
      %p118 = scmp.eq.s32.totalorder %s21, 1
      %p119 = por %p117, %p118
      %p121 = scmp.ne.s32.totalorder %s104, %s120
      %p122 = scmp.eq.s32.totalorder %s21, 0
      %p123 = por %p121, %p122
      %s124 = ssub.s32 %s24, %s33
      %p125 = scmp.eq.s32.totalorder %s124, 0
      %s127 = sadd.s32 %s126, 1
      %s128 = scalar_select %p125, %s126, %s127
      %p131 = pneg %p125
      %p132 = scmp.eq.s32.totalorder %s15, 1
      %p133 = por %p131, %p132
      %p134 = scmp.ne.s32.totalorder %s126, %s129
      %p135 = scmp.eq.s32.totalorder %s15, 0
      %p136 = por %p134, %p135
      %p137 = scmp.ne.s32.totalorder %s126, %s129
      %p138 = scmp.eq.s32.totalorder %s20, 1
      %p139 = por %p137, %p138
      %p140 = scmp.ne.s32.totalorder %s129, %s130
      %p141 = scmp.eq.s32.totalorder %s20, 0
      %p142 = por %p140, %p141
      %p143 = scmp.ne.s32.totalorder %s129, %s130
      %p144 = scmp.eq.s32.totalorder %s21, 1
      %p145 = por %p143, %p144
      %p147 = scmp.ne.s32.totalorder %s130, %s146
      %p148 = scmp.eq.s32.totalorder %s21, 0
      %p149 = por %p147, %p148
      %s150 = ssub.s32 %s23, %s37
      %p151 = scmp.eq.s32.totalorder %s150, 0
      %s153 = sadd.s32 %s152, 1
      %s154 = scalar_select %p151, %s152, %s153
      %p157 = pneg %p151
      %p158 = scmp.eq.s32.totalorder %s15, 1
      %p159 = por %p157, %p158
      %p160 = scmp.ne.s32.totalorder %s152, %s155
      %p161 = scmp.eq.s32.totalorder %s15, 0
      %p162 = por %p160, %p161
      %p163 = scmp.ne.s32.totalorder %s152, %s155
      %p164 = scmp.eq.s32.totalorder %s20, 1
      %p165 = por %p163, %p164
      %p166 = scmp.ne.s32.totalorder %s155, %s156
      %p167 = scmp.eq.s32.totalorder %s20, 0
      %p168 = por %p166, %p167
      %p169 = scmp.ne.s32.totalorder %s155, %s156
      %p170 = scmp.eq.s32.totalorder %s21, 1
      %p171 = por %p169, %p170
      %p173 = scmp.ne.s32.totalorder %s156, %s172
      %p174 = scmp.eq.s32.totalorder %s21, 0
      %p175 = por %p173, %p174
      %s176 = ssub.s32 %s23, %s37
      %p177 = scmp.eq.s32.totalorder %s176, 0
      %s179 = sadd.s32 %s178, 1
      %s180 = scalar_select %p177, %s178, %s179
      %p183 = pneg %p177
      %p184 = scmp.eq.s32.totalorder %s15, 1
      %p185 = por %p183, %p184
      %p186 = scmp.ne.s32.totalorder %s178, %s181
      %p187 = scmp.eq.s32.totalorder %s15, 0
      %p188 = por %p186, %p187
      %p189 = scmp.ne.s32.totalorder %s178, %s181
      %p190 = scmp.eq.s32.totalorder %s20, 1
      %p191 = por %p189, %p190
      %p192 = scmp.ne.s32.totalorder %s181, %s182
      %p193 = scmp.eq.s32.totalorder %s20, 0
      %p194 = por %p192, %p193
      %p195 = scmp.ne.s32.totalorder %s181, %s182
      %p196 = scmp.eq.s32.totalorder %s21, 1
      %p197 = por %p195, %p196
      %p199 = scmp.ne.s32.totalorder %s182, %s198
      %p200 = scmp.eq.s32.totalorder %s21, 0
      %p201 = por %p199, %p200
      %s202 = ssub.s32 %s22, %s41
      %s203 = ssub.s32 %s23, %s37
      %s204 = sor.u32 %s202, %s203
      %p205 = scmp.eq.s32.totalorder %s204, 0
      %s207 = sadd.s32 %s206, 1
      %s208 = scalar_select %p205, %s206, %s207
      %p211 = pneg %p205
      %p212 = scmp.eq.s32.totalorder %s15, 1
      %p213 = por %p211, %p212
      %p214 = scmp.ne.s32.totalorder %s206, %s209
      %p215 = scmp.eq.s32.totalorder %s15, 0
      %p216 = por %p214, %p215
      %p217 = scmp.ne.s32.totalorder %s206, %s209
      %p218 = scmp.eq.s32.totalorder %s20, 1
      %p219 = por %p217, %p218
      %p220 = scmp.ne.s32.totalorder %s209, %s210
      %p221 = scmp.eq.s32.totalorder %s20, 0
      %p222 = por %p220, %p221
      %p223 = scmp.ne.s32.totalorder %s209, %s210
      %p224 = scmp.eq.s32.totalorder %s21, 1
      %p225 = por %p223, %p224
      %p227 = scmp.ne.s32.totalorder %s210, %s226
      %p228 = scmp.eq.s32.totalorder %s21, 0
      %p229 = por %p227, %p228
      %p230 = scmp.le.s32.totalorder 1, %s15
      %p231 = scmp.lt.s32.totalorder %s15, 3
      %p232 = pnand %p230, %p231
      %p233 = pneg %p232
      // Predicated region
      $region9: #{tpu_custom_call.1} parent=5 // pred_check
        _
      $region10: #{tpu_custom_call.1} parent=5 // pred_check_branch
        %235 = sbr.rel (%p232) target = $region12
      $region11: #{tpu_custom_call.1} parent=5 // pred_region
        %s236 = ssub.s32 %s15, 1
        // Predicated region
        $region13: #{tpu_custom_call.1} parent=11 // pred_check
          %p237 = pneg %p90
        $region14: #{tpu_custom_call.1} parent=11 // pred_check_branch
          %239 = sbr.rel (%p237) target = $region16
        $region15: #{tpu_custom_call.1} parent=11 // pred_region
          %s240 = smul.u32 48, %s27
          %p241 = scmp.lt.s32.totalorder %s240, 47
          %s242 = scalar_select %p241, %s240, 47
          %p243 = scmp.lt.s32.totalorder %s26, 0
          %s244 = scalar_select %p243, %s26, 0
          %s245 = sadd.s32 %s244, %s242
          %s246 = smul.addr %s245, 4
          %s247 = scalar_lea.vmem %s1, %s246
          %s248 = smul.u32 48, %s27
        $region16: #{tpu_custom_call.1} parent=11 // pred_fallthru
          _
        // Predicated region
        $region17: #{tpu_custom_call.1} parent=11 // pred_check
          %p249 = pneg %p116
        $region18: #{tpu_custom_call.1} parent=11 // pred_check_branch
          %251 = sbr.rel (%p249) target = $region20
        $region19: #{tpu_custom_call.1} parent=11 // pred_region
          %s252 = smul.u32 3, %s27
          %p253 = scmp.lt.s32.totalorder %s252, 2
          %s254 = scalar_select %p253, %s252, 2
          %s255 = scalar_lea.vmem %s2, %s254
          %s256 = smul.u32 3, %s27
        $region20: #{tpu_custom_call.1} parent=11 // pred_fallthru
          _
        // Predicated region
        $region21: #{tpu_custom_call.1} parent=11 // pred_check
          %p257 = pneg %p142
        $region22: #{tpu_custom_call.1} parent=11 // pred_check_branch
          %259 = sbr.rel (%p257) target = $region24
        $region23: #{tpu_custom_call.1} parent=11 // pred_region
          %s260 = smul.u32 3, %s27
          %p261 = scmp.lt.s32.totalorder %s260, 2
          %s262 = scalar_select %p261, %s260, 2
          %s263 = scalar_lea.vmem %s3, %s262
          %s264 = smul.u32 3, %s27
        $region24: #{tpu_custom_call.1} parent=11 // pred_fallthru
          _
        // Predicated region
        $region25: #{tpu_custom_call.1} parent=11 // pred_check
          %p265 = pneg %p168
        $region26: #{tpu_custom_call.1} parent=11 // pred_check_branch
          %267 = sbr.rel (%p265) target = $region28
        $region27: #{tpu_custom_call.1} parent=11 // pred_region
          %p268 = scmp.lt.s32.totalorder %s26, 0
          %s269 = scalar_select %p268, %s26, 0
          %s270 = scalar_lea.vmem %s4, %s269
        $region28: #{tpu_custom_call.1} parent=11 // pred_fallthru
          _
        // Predicated region
        $region29: #{tpu_custom_call.1} parent=11 // pred_check
          %p271 = pneg %p194
        $region30: #{tpu_custom_call.1} parent=11 // pred_check_branch
          %273 = sbr.rel (%p271) target = $region32
        $region31: #{tpu_custom_call.1} parent=11 // pred_region
          %p274 = scmp.lt.s32.totalorder %s26, 0
          %s275 = scalar_select %p274, %s26, 0
          %s276 = scalar_lea.vmem %s5, %s275
        $region32: #{tpu_custom_call.1} parent=11 // pred_fallthru
          _
      $region12: #{tpu_custom_call.1} parent=5 // pred_fallthru
        _
      %p277 = scmp.lt.s32.totalorder %s15, 2
      // Predicated region
      $region33: #{tpu_custom_call.1} parent=5 // pred_check
        %p278 = pneg %p277
      $region34: #{tpu_custom_call.1} parent=5 // pred_check_branch
        %280 = sbr.rel (%p278) target = $region36
      $region35: #{tpu_custom_call.1} parent=5 // pred_region
        // Predicated region
        $region37: #{tpu_custom_call.1} parent=35 // pred_check
          %p281 = pneg %p56
        $region38: #{tpu_custom_call.1} parent=35 // pred_check_branch
          %283 = sbr.rel (%p281) target = $region40
        $region39: #{tpu_custom_call.1} parent=35 // pred_region
          %s284 = sand.u32 %s46, 1
          %s285 = scalar_lea.sflag [#allocation4], %s284
          %s286 = sand.u32 %s46, 1
          %s287 = smul.addr %s286, 384
          %s288 = scalar_lea.vmem [#allocation3], %s287
          %s289 = smul.u32 32, %s22
          %s290 = smul.u32 3, %s24
          %s292 = ssub.s32 6144, 6144
          %293 = vsyncadd %s285, %s292
          %s294 = smul.addr %s289, 3
          %s295 = sadd.s32 %s290, %s294
          %s296 = smul.addr %s295, 64
          %s297 = scalar_lea.hbm %s0, %s296
          %s298 = sshll.u32 %s288, 4
          %s299 = int_to_ptr.vmem [resolvable:$true] %s298
          %304 = dma.hbm_to_vmem [thread:$0]  %s297, 6144, %s299, %s285, 192, 192, 12
        $region40: #{tpu_custom_call.1} parent=35 // pred_fallthru
          _
      $region36: #{tpu_custom_call.1} parent=5 // pred_fallthru
        _
      %p305 = scmp.le.s32.totalorder 1, %s15
      %p306 = scmp.lt.s32.totalorder %s15, 3
      %p307 = pnand %p305, %p306
      %p308 = pneg %p307
      // Predicated region
      $region41: #{tpu_custom_call.1} parent=5 // pred_check
        _
      $region42: #{tpu_custom_call.1} parent=5 // pred_check_branch
        %310 = sbr.rel (%p307) target = $region44
      $region43: #{tpu_custom_call.1} parent=5 // pred_region
        %s311 = ssub.s32 %s15, 1
        %s312 = sand.u32 %s49, 1
        %s313 = scalar_lea.sflag [#allocation4], %s312
        %s314 = sand.u32 %s49, 1
        %s315 = smul.addr %s314, 384
        %s316 = scalar_lea.vmem [#allocation3], %s315
        // Predicated region
        $region45: #{tpu_custom_call.1} parent=43 // pred_check
          %p317 = pneg %p62
        $region46: #{tpu_custom_call.1} parent=43 // pred_check_branch
          %319 = sbr.rel (%p317) target = $region48
        $region47: #{tpu_custom_call.1} parent=43 // pred_region
          %320 = dma.done %s313, 6144
        $region48: #{tpu_custom_call.1} parent=43 // pred_fallthru
          _
        %s321 = sand.u32 %s49, 1
        %s322 = scalar_lea.sflag [#allocation4], %s321
        %s323 = sand.u32 %s49, 1
        %s324 = smul.addr %s323, 384
        %s325 = scalar_lea.vmem [#allocation3], %s324
        %p326 = pneg %p62
        %p327 = pneg %p59
        %s328 = smul.u32 48, %s27
        %p329 = scmp.lt.s32.totalorder %s328, 47
        %s330 = scalar_select %p329, %s328, 47
        %p331 = scmp.lt.s32.totalorder %s26, 0
        %s332 = scalar_select %p331, %s26, 0
        %s333 = sadd.s32 %s332, %s330
        %s334 = smul.addr %s333, 4
        %s335 = scalar_lea.vmem %s1, %s334
        %p336 = pneg %p90
        %p337 = pneg %p87
        %s338 = smul.u32 3, %s27
        %p339 = scmp.lt.s32.totalorder %s338, 2
        %s340 = scalar_select %p339, %s338, 2
        %s341 = scalar_lea.vmem %s2, %s340
        %p342 = pneg %p116
        %p343 = pneg %p113
        %s344 = smul.u32 3, %s27
        %p345 = scmp.lt.s32.totalorder %s344, 2
        %s346 = scalar_select %p345, %s344, 2
        %s347 = scalar_lea.vmem %s3, %s346
        %p348 = pneg %p142
        %p349 = pneg %p139
        %p350 = scmp.lt.s32.totalorder %s26, 0
        %s351 = scalar_select %p350, %s26, 0
        %s352 = scalar_lea.vmem %s4, %s351
        %p353 = pneg %p168
        %p354 = pneg %p165
        %p355 = scmp.lt.s32.totalorder %s26, 0
        %s356 = scalar_select %p355, %s26, 0
        %s357 = scalar_lea.vmem %s5, %s356
        %p358 = pneg %p194
        %p359 = pneg %p191
        %p360 = pneg %p222
        %p361 = pneg %p219
        %s362 = smul.u32 32, %s25
        %p363 = scmp.lt.s32.totalorder %s362, 63
        %s364 = scalar_select %p363, %s362, 63
        %p365 = scmp.lt.s32.totalorder %s26, 0
        %s366 = scalar_select %p365, %s26, 0
        %s367 = sadd.s32 %s366, %s364
        %s368 = smul.addr %s367, 4
        %s369 = scalar_lea.vmem %s6, %s368
        %s370 = smul.u32 32, %s25
        %s371 = smul.u32 3, %s27
        %s372 = smul.u32 48, %s27
        %p373 = scmp.lt.s32.totalorder %s372, 47
        %s374 = scalar_select %p373, %s372, 47
        %p375 = scmp.lt.s32.totalorder %s26, 0
        %s376 = scalar_select %p375, %s26, 0
        %s377 = sadd.s32 %s376, %s374
        %s378 = smul.addr %s377, 4
        %s379 = scalar_lea.vmem %s1, %s378
        %s380 = smul.u32 48, %s27
        %s381 = smul.u32 3, %s27
        %p382 = scmp.lt.s32.totalorder %s381, 2
        %s383 = scalar_select %p382, %s381, 2
        %s384 = scalar_lea.vmem %s2, %s383
        %s385 = smul.u32 3, %s27
        %s386 = smul.u32 3, %s27
        %p387 = scmp.lt.s32.totalorder %s386, 2
        %s388 = scalar_select %p387, %s386, 2
        %s389 = scalar_lea.vmem %s3, %s388
        %s390 = smul.u32 3, %s27
        %p391 = scmp.lt.s32.totalorder %s26, 0
        %s392 = scalar_select %p391, %s26, 0
        %s393 = scalar_lea.vmem %s4, %s392
        %p394 = scmp.lt.s32.totalorder %s26, 0
        %s395 = scalar_select %p394, %s26, 0
        %s396 = scalar_lea.vmem %s5, %s395
        %s397 = smul.u32 32, %s25
        %p398 = scmp.lt.s32.totalorder %s397, 63
        %s399 = scalar_select %p398, %s397, 63
        %p400 = scmp.lt.s32.totalorder %s26, 0
        %s401 = scalar_select %p400, %s26, 0
        %s402 = sadd.s32 %s401, %s399
        %s403 = smul.addr %s402, 4
        %s404 = scalar_lea.vmem %s6, %s403
        %s405 = smul.u32 32, %s25
        %p407 = scmp.eq.s32.totalorder %s27, 0
        // Predicated region
        $region49: #{tpu_custom_call.1} parent=43 // pred_check
          %p408 = pneg %p407
        $region50: #{tpu_custom_call.1} parent=43 // pred_check_branch
          %410 = sbr.rel (%p408) target = $region52
        $region51: #{tpu_custom_call.1} parent=43 // pred_region
          %vm411 = vcmask 523264
          %412 = vst.msk [vmem:[#allocation2] sm:$0xff] %vm411, 0.0
          %413 = vst.msk [vmem:[#allocation2 + $0x8] sm:$0xff] %vm411, 0.0
          %414 = vst.msk [vmem:[#allocation2 + $0x10] sm:$0xff] %vm411, 0.0
          %415 = vst.msk [vmem:[#allocation2 + $0x18] sm:$0xff] %vm411, 0.0
          %416 = vst.msk [vmem:[#allocation2 + $0x20] sm:$0xff] %vm411, 0.0
          %417 = vst.msk [vmem:[#allocation2 + $0x28] sm:$0xff] %vm411, 0.0
          %418 = vst.msk [vmem:[#allocation2 + $0x30] sm:$0xff] %vm411, 0.0
          %419 = vst.msk [vmem:[#allocation2 + $0x38] sm:$0xff] %vm411, 0.0
          %420 = vst.msk [vmem:[#allocation2 + $0x40] sm:$0xff] %vm411, 0.0
          %421 = vst.msk [vmem:[#allocation2 + $0x48] sm:$0xff] %vm411, 0.0
          %422 = vst.msk [vmem:[#allocation2 + $0x50] sm:$0xff] %vm411, 0.0
          %423 = vst.msk [vmem:[#allocation2 + $0x58] sm:$0xff] %vm411, 0.0
          %424 = vst.msk [vmem:[#allocation2 + $0x60] sm:$0xff] %vm411, 0.0
          %425 = vst.msk [vmem:[#allocation2 + $0x68] sm:$0xff] %vm411, 0.0
          %426 = vst.msk [vmem:[#allocation2 + $0x70] sm:$0xff] %vm411, 0.0
          %427 = vst.msk [vmem:[#allocation2 + $0x78] sm:$0xff] %vm411, 0.0
          %428 = vst.msk [vmem:[#allocation2 + $0x80] sm:$0xff] %vm411, 0.0
          %429 = vst.msk [vmem:[#allocation2 + $0x88] sm:$0xff] %vm411, 0.0
          %430 = vst.msk [vmem:[#allocation2 + $0x90] sm:$0xff] %vm411, 0.0
          %431 = vst.msk [vmem:[#allocation2 + $0x98] sm:$0xff] %vm411, 0.0
          %432 = vst.msk [vmem:[#allocation2 + $0xa0] sm:$0xff] %vm411, 0.0
          %433 = vst.msk [vmem:[#allocation2 + $0xa8] sm:$0xff] %vm411, 0.0
          %434 = vst.msk [vmem:[#allocation2 + $0xb0] sm:$0xff] %vm411, 0.0
          %435 = vst.msk [vmem:[#allocation2 + $0xb8] sm:$0xff] %vm411, 0.0
          %436 = vst.msk [vmem:[#allocation2 + $0xc0] sm:$0xff] %vm411, 0.0
          %437 = vst.msk [vmem:[#allocation2 + $0xc8] sm:$0xff] %vm411, 0.0
          %438 = vst.msk [vmem:[#allocation2 + $0xd0] sm:$0xff] %vm411, 0.0
          %439 = vst.msk [vmem:[#allocation2 + $0xd8] sm:$0xff] %vm411, 0.0
          %440 = vst.msk [vmem:[#allocation2 + $0xe0] sm:$0xff] %vm411, 0.0
          %441 = vst.msk [vmem:[#allocation2 + $0xe8] sm:$0xff] %vm411, 0.0
          %442 = vst.msk [vmem:[#allocation2 + $0xf0] sm:$0xff] %vm411, 0.0
          %443 = vst.msk [vmem:[#allocation2 + $0xf8] sm:$0xff] %vm411, 0.0
        $region52: #{tpu_custom_call.1} parent=43 // pred_fallthru
          _
        %v444 = vld [vmem:[%s316] sm:$0xff]
        %v445 = vld [vmem:[%s316 + $0x8] sm:$0xf]
        %v446 = vld [vmem:[%s316 + $0xc] sm:$0xff]
        %v447 = vld [vmem:[%s316 + $0x14] sm:$0xf]
        %v448 = vld [vmem:[%s316 + $0x18] sm:$0xff]
        %v449 = vld [vmem:[%s316 + $0x20] sm:$0xf]
        %v450 = vld [vmem:[%s316 + $0x24] sm:$0xff]
        %v451 = vld [vmem:[%s316 + $0x2c] sm:$0xf]
        %v452 = vld [vmem:[%s316 + $0x30] sm:$0xff]
        %v453 = vld [vmem:[%s316 + $0x38] sm:$0xf]
        %v454 = vld [vmem:[%s316 + $0x3c] sm:$0xff]
        %v455 = vld [vmem:[%s316 + $0x44] sm:$0xf]
        %v456 = vld [vmem:[%s316 + $0x48] sm:$0xff]
        %v457 = vld [vmem:[%s316 + $0x50] sm:$0xf]
        %v458 = vld [vmem:[%s316 + $0x54] sm:$0xff]
        %v459 = vld [vmem:[%s316 + $0x5c] sm:$0xf]
        %v460 = vld [vmem:[%s316 + $0x60] sm:$0xff]
        %v461 = vld [vmem:[%s316 + $0x68] sm:$0xf]
        %v462 = vld [vmem:[%s316 + $0x6c] sm:$0xff]
        %v463 = vld [vmem:[%s316 + $0x74] sm:$0xf]
        %v464 = vld [vmem:[%s316 + $0x78] sm:$0xff]
        %v465 = vld [vmem:[%s316 + $0x80] sm:$0xf]
        %v466 = vld [vmem:[%s316 + $0x84] sm:$0xff]
        %v467 = vld [vmem:[%s316 + $0x8c] sm:$0xf]
        %v468 = vld [vmem:[%s316 + $0x90] sm:$0xff]
        %v469 = vld [vmem:[%s316 + $0x98] sm:$0xf]
        %v470 = vld [vmem:[%s316 + $0x9c] sm:$0xff]
        %v471 = vld [vmem:[%s316 + $0xa4] sm:$0xf]
        %v472 = vld [vmem:[%s316 + $0xa8] sm:$0xff]
        %v473 = vld [vmem:[%s316 + $0xb0] sm:$0xf]
        %v474 = vld [vmem:[%s316 + $0xb4] sm:$0xff]
        %v475 = vld [vmem:[%s316 + $0xbc] sm:$0xf]
        %v476 = vld [vmem:[%s316 + $0xc0] sm:$0xff]
        %v477 = vld [vmem:[%s316 + $0xc8] sm:$0xf]
        %v478 = vld [vmem:[%s316 + $0xcc] sm:$0xff]
        %v479 = vld [vmem:[%s316 + $0xd4] sm:$0xf]
        %v480 = vld [vmem:[%s316 + $0xd8] sm:$0xff]
        %v481 = vld [vmem:[%s316 + $0xe0] sm:$0xf]
        %v482 = vld [vmem:[%s316 + $0xe4] sm:$0xff]
        %v483 = vld [vmem:[%s316 + $0xec] sm:$0xf]
        %v484 = vld [vmem:[%s316 + $0xf0] sm:$0xff]
        %v485 = vld [vmem:[%s316 + $0xf8] sm:$0xf]
        %v486 = vld [vmem:[%s316 + $0xfc] sm:$0xff]
        %v487 = vld [vmem:[%s316 + $0x104] sm:$0xf]
        %v488 = vld [vmem:[%s316 + $0x108] sm:$0xff]
        %v489 = vld [vmem:[%s316 + $0x110] sm:$0xf]
        %v490 = vld [vmem:[%s316 + $0x114] sm:$0xff]
        %v491 = vld [vmem:[%s316 + $0x11c] sm:$0xf]
        %v492 = vld [vmem:[%s316 + $0x120] sm:$0xff]
        %v493 = vld [vmem:[%s316 + $0x128] sm:$0xf]
        %v494 = vld [vmem:[%s316 + $0x12c] sm:$0xff]
        %v495 = vld [vmem:[%s316 + $0x134] sm:$0xf]
        %v496 = vld [vmem:[%s316 + $0x138] sm:$0xff]
        %v497 = vld [vmem:[%s316 + $0x140] sm:$0xf]
        %v498 = vld [vmem:[%s316 + $0x144] sm:$0xff]
        %v499 = vld [vmem:[%s316 + $0x14c] sm:$0xf]
        %v500 = vld [vmem:[%s316 + $0x150] sm:$0xff]
        %v501 = vld [vmem:[%s316 + $0x158] sm:$0xf]
        %v502 = vld [vmem:[%s316 + $0x15c] sm:$0xff]
        %v503 = vld [vmem:[%s316 + $0x164] sm:$0xf]
        %v504 = vld [vmem:[%s316 + $0x168] sm:$0xff]
        %v505 = vld [vmem:[%s316 + $0x170] sm:$0xf]
        %v506 = vld [vmem:[%s316 + $0x174] sm:$0xff]
        %v507 = vld [vmem:[%s316 + $0x17c] sm:$0xf]
        %v508 = vunpack.c.l.bf16 %v444
        %v509 = vunpack.c.h.bf16 %v444
        %v510 = vunpack.c.l.bf16 %v445
        %v511 = vunpack.c.l.bf16 %v446
        %v512 = vunpack.c.h.bf16 %v446
        %v513 = vunpack.c.l.bf16 %v447
        %v514 = vunpack.c.l.bf16 %v448
        %v515 = vunpack.c.h.bf16 %v448
        %v516 = vunpack.c.l.bf16 %v449
        %v517 = vunpack.c.l.bf16 %v450
        %v518 = vunpack.c.h.bf16 %v450
        %v519 = vunpack.c.l.bf16 %v451
        %v520 = vunpack.c.l.bf16 %v452
        %v521 = vunpack.c.h.bf16 %v452
        %v522 = vunpack.c.l.bf16 %v453
        %v523 = vunpack.c.l.bf16 %v454
        %v524 = vunpack.c.h.bf16 %v454
        %v525 = vunpack.c.l.bf16 %v455
        %v526 = vunpack.c.l.bf16 %v456
        %v527 = vunpack.c.h.bf16 %v456
        %v528 = vunpack.c.l.bf16 %v457
        %v529 = vunpack.c.l.bf16 %v458
        %v530 = vunpack.c.h.bf16 %v458
        %v531 = vunpack.c.l.bf16 %v459
        %v532 = vunpack.c.l.bf16 %v460
        %v533 = vunpack.c.h.bf16 %v460
        %v534 = vunpack.c.l.bf16 %v461
        %v535 = vunpack.c.l.bf16 %v462
        %v536 = vunpack.c.h.bf16 %v462
        %v537 = vunpack.c.l.bf16 %v463
        %v538 = vunpack.c.l.bf16 %v464
        %v539 = vunpack.c.h.bf16 %v464
        %v540 = vunpack.c.l.bf16 %v465
        %v541 = vunpack.c.l.bf16 %v466
        %v542 = vunpack.c.h.bf16 %v466
        %v543 = vunpack.c.l.bf16 %v467
        %v544 = vunpack.c.l.bf16 %v468
        %v545 = vunpack.c.h.bf16 %v468
        %v546 = vunpack.c.l.bf16 %v469
        %v547 = vunpack.c.l.bf16 %v470
        %v548 = vunpack.c.h.bf16 %v470
        %v549 = vunpack.c.l.bf16 %v471
        %v550 = vunpack.c.l.bf16 %v472
        %v551 = vunpack.c.h.bf16 %v472
        %v552 = vunpack.c.l.bf16 %v473
        %v553 = vunpack.c.l.bf16 %v474
        %v554 = vunpack.c.h.bf16 %v474
        %v555 = vunpack.c.l.bf16 %v475
        %v556 = vunpack.c.l.bf16 %v476
        %v557 = vunpack.c.h.bf16 %v476
        %v558 = vunpack.c.l.bf16 %v477
        %v559 = vunpack.c.l.bf16 %v478
        %v560 = vunpack.c.h.bf16 %v478
        %v561 = vunpack.c.l.bf16 %v479
        %v562 = vunpack.c.l.bf16 %v480
        %v563 = vunpack.c.h.bf16 %v480
        %v564 = vunpack.c.l.bf16 %v481
        %v565 = vunpack.c.l.bf16 %v482
        %v566 = vunpack.c.h.bf16 %v482
        %v567 = vunpack.c.l.bf16 %v483
        %v568 = vunpack.c.l.bf16 %v484
        %v569 = vunpack.c.h.bf16 %v484
        %v570 = vunpack.c.l.bf16 %v485
        %v571 = vunpack.c.l.bf16 %v486
        %v572 = vunpack.c.h.bf16 %v486
        %v573 = vunpack.c.l.bf16 %v487
        %v574 = vunpack.c.l.bf16 %v488
        %v575 = vunpack.c.h.bf16 %v488
        %v576 = vunpack.c.l.bf16 %v489
        %v577 = vunpack.c.l.bf16 %v490
        %v578 = vunpack.c.h.bf16 %v490
        %v579 = vunpack.c.l.bf16 %v491
        %v580 = vunpack.c.l.bf16 %v492
        %v581 = vunpack.c.h.bf16 %v492
        %v582 = vunpack.c.l.bf16 %v493
        %v583 = vunpack.c.l.bf16 %v494
        %v584 = vunpack.c.h.bf16 %v494
        %v585 = vunpack.c.l.bf16 %v495
        %v586 = vunpack.c.l.bf16 %v496
        %v587 = vunpack.c.h.bf16 %v496
        %v588 = vunpack.c.l.bf16 %v497
        %v589 = vunpack.c.l.bf16 %v498
        %v590 = vunpack.c.h.bf16 %v498
        %v591 = vunpack.c.l.bf16 %v499
        %v592 = vunpack.c.l.bf16 %v500
        %v593 = vunpack.c.h.bf16 %v500
        %v594 = vunpack.c.l.bf16 %v501
        %v595 = vunpack.c.l.bf16 %v502
        %v596 = vunpack.c.h.bf16 %v502
        %v597 = vunpack.c.l.bf16 %v503
        %v598 = vunpack.c.l.bf16 %v504
        %v599 = vunpack.c.h.bf16 %v504
        %v600 = vunpack.c.l.bf16 %v505
        %v601 = vunpack.c.l.bf16 %v506
        %v602 = vunpack.c.h.bf16 %v506
        %v603 = vunpack.c.l.bf16 %v507
        %v604 = vld [vmem:[%s384] sm:$0x7]
        %v606 = vlaneseq
        %v607 = vshrl.u32 %v606, 7
        %v608 = vsub.s32 0, %v607
        %v609 = vrot.slane %v604, %v608
        %v610 = vlaneseq
        %v611 = vshrl.u32 %v610, 7
        %v612 = vsub.s32 1, %v611
        %v613 = vrot.slane %v604, %v612
        %v614 = vlaneseq
        %v615 = vshrl.u32 %v614, 7
        %v616 = vsub.s32 2, %v615
        %v617 = vrot.slane %v604, %v616
        %v621 = vmul.f32 %v508, %v609
        %v622 = vmul.f32 %v509, %v613
        %v623 = vmul.f32 %v510, %v617
        %v624 = vmul.f32 %v511, %v609
        %v625 = vmul.f32 %v512, %v613
        %v626 = vmul.f32 %v513, %v617
        %v627 = vmul.f32 %v514, %v609
        %v628 = vmul.f32 %v515, %v613
        %v629 = vmul.f32 %v516, %v617
        %v630 = vmul.f32 %v517, %v609
        %v631 = vmul.f32 %v518, %v613
        %v632 = vmul.f32 %v519, %v617
        %v633 = vmul.f32 %v520, %v609
        %v634 = vmul.f32 %v521, %v613
        %v635 = vmul.f32 %v522, %v617
        %v636 = vmul.f32 %v523, %v609
        %v637 = vmul.f32 %v524, %v613
        %v638 = vmul.f32 %v525, %v617
        %v639 = vmul.f32 %v526, %v609
        %v640 = vmul.f32 %v527, %v613
        %v641 = vmul.f32 %v528, %v617
        %v642 = vmul.f32 %v529, %v609
        %v643 = vmul.f32 %v530, %v613
        %v644 = vmul.f32 %v531, %v617
        %v645 = vmul.f32 %v532, %v609
        %v646 = vmul.f32 %v533, %v613
        %v647 = vmul.f32 %v534, %v617
        %v648 = vmul.f32 %v535, %v609
        %v649 = vmul.f32 %v536, %v613
        %v650 = vmul.f32 %v537, %v617
        %v651 = vmul.f32 %v538, %v609
        %v652 = vmul.f32 %v539, %v613
        %v653 = vmul.f32 %v540, %v617
        %v654 = vmul.f32 %v541, %v609
        %v655 = vmul.f32 %v542, %v613
        %v656 = vmul.f32 %v543, %v617
        %v657 = vmul.f32 %v544, %v609
        %v658 = vmul.f32 %v545, %v613
        %v659 = vmul.f32 %v546, %v617
        %v660 = vmul.f32 %v547, %v609
        %v661 = vmul.f32 %v548, %v613
        %v662 = vmul.f32 %v549, %v617
        %v663 = vmul.f32 %v550, %v609
        %v664 = vmul.f32 %v551, %v613
        %v665 = vmul.f32 %v552, %v617
        %v666 = vmul.f32 %v553, %v609
        %v667 = vmul.f32 %v554, %v613
        %v668 = vmul.f32 %v555, %v617
        %v669 = vmul.f32 %v556, %v609
        %v670 = vmul.f32 %v557, %v613
        %v671 = vmul.f32 %v558, %v617
        %v672 = vmul.f32 %v559, %v609
        %v673 = vmul.f32 %v560, %v613
        %v674 = vmul.f32 %v561, %v617
        %v675 = vmul.f32 %v562, %v609
        %v676 = vmul.f32 %v563, %v613
        %v677 = vmul.f32 %v564, %v617
        %v678 = vmul.f32 %v565, %v609
        %v679 = vmul.f32 %v566, %v613
        %v680 = vmul.f32 %v567, %v617
        %v681 = vmul.f32 %v568, %v609
        %v682 = vmul.f32 %v569, %v613
        %v683 = vmul.f32 %v570, %v617
        %v684 = vmul.f32 %v571, %v609
        %v685 = vmul.f32 %v572, %v613
        %v686 = vmul.f32 %v573, %v617
        %v687 = vmul.f32 %v574, %v609
        %v688 = vmul.f32 %v575, %v613
        %v689 = vmul.f32 %v576, %v617
        %v690 = vmul.f32 %v577, %v609
        %v691 = vmul.f32 %v578, %v613
        %v692 = vmul.f32 %v579, %v617
        %v693 = vmul.f32 %v580, %v609
        %v694 = vmul.f32 %v581, %v613
        %v695 = vmul.f32 %v582, %v617
        %v696 = vmul.f32 %v583, %v609
        %v697 = vmul.f32 %v584, %v613
        %v698 = vmul.f32 %v585, %v617
        %v699 = vmul.f32 %v586, %v609
        %v700 = vmul.f32 %v587, %v613
        %v701 = vmul.f32 %v588, %v617
        %v702 = vmul.f32 %v589, %v609
        %v703 = vmul.f32 %v590, %v613
        %v704 = vmul.f32 %v591, %v617
        %v705 = vmul.f32 %v592, %v609
        %v706 = vmul.f32 %v593, %v613
        %v707 = vmul.f32 %v594, %v617
        %v708 = vmul.f32 %v595, %v609
        %v709 = vmul.f32 %v596, %v613
        %v710 = vmul.f32 %v597, %v617
        %v711 = vmul.f32 %v598, %v609
        %v712 = vmul.f32 %v599, %v613
        %v713 = vmul.f32 %v600, %v617
        %v714 = vmul.f32 %v601, %v609
        %v715 = vmul.f32 %v602, %v613
        %v716 = vmul.f32 %v603, %v617
        %v717 = vld [vmem:[%s389] sm:$0x7]
        %v719 = vlaneseq
        %v720 = vshrl.u32 %v719, 7
        %v721 = vsub.s32 0, %v720
        %v722 = vrot.slane %v717, %v721
        %v723 = vlaneseq
        %v724 = vshrl.u32 %v723, 7
        %v725 = vsub.s32 1, %v724
        %v726 = vrot.slane %v717, %v725
        %v727 = vlaneseq
        %v728 = vshrl.u32 %v727, 7
        %v729 = vsub.s32 2, %v728
        %v730 = vrot.slane %v717, %v729
        %v734 = vadd.f32 %v621, %v722
        %v735 = vadd.f32 %v622, %v726
        %v736 = vadd.f32 %v623, %v730
        %v737 = vadd.f32 %v624, %v722
        %v738 = vadd.f32 %v625, %v726
        %v739 = vadd.f32 %v626, %v730
        %v740 = vadd.f32 %v627, %v722
        %v741 = vadd.f32 %v628, %v726
        %v742 = vadd.f32 %v629, %v730
        %v743 = vadd.f32 %v630, %v722
        %v744 = vadd.f32 %v631, %v726
        %v745 = vadd.f32 %v632, %v730
        %v746 = vadd.f32 %v633, %v722
        %v747 = vadd.f32 %v634, %v726
        %v748 = vadd.f32 %v635, %v730
        %v749 = vadd.f32 %v636, %v722
        %v750 = vadd.f32 %v637, %v726
        %v751 = vadd.f32 %v638, %v730
        %v752 = vadd.f32 %v639, %v722
        %v753 = vadd.f32 %v640, %v726
        %v754 = vadd.f32 %v641, %v730
        %v755 = vadd.f32 %v642, %v722
        %v756 = vadd.f32 %v643, %v726
        %v757 = vadd.f32 %v644, %v730
        %v758 = vadd.f32 %v645, %v722
        %v759 = vadd.f32 %v646, %v726
        %v760 = vadd.f32 %v647, %v730
        %v761 = vadd.f32 %v648, %v722
        %v762 = vadd.f32 %v649, %v726
        %v763 = vadd.f32 %v650, %v730
        %v764 = vadd.f32 %v651, %v722
        %v765 = vadd.f32 %v652, %v726
        %v766 = vadd.f32 %v653, %v730
        %v767 = vadd.f32 %v654, %v722
        %v768 = vadd.f32 %v655, %v726
        %v769 = vadd.f32 %v656, %v730
        %v770 = vadd.f32 %v657, %v722
        %v771 = vadd.f32 %v658, %v726
        %v772 = vadd.f32 %v659, %v730
        %v773 = vadd.f32 %v660, %v722
        %v774 = vadd.f32 %v661, %v726
        %v775 = vadd.f32 %v662, %v730
        %v776 = vadd.f32 %v663, %v722
        %v777 = vadd.f32 %v664, %v726
        %v778 = vadd.f32 %v665, %v730
        %v779 = vadd.f32 %v666, %v722
        %v780 = vadd.f32 %v667, %v726
        %v781 = vadd.f32 %v668, %v730
        %v782 = vadd.f32 %v669, %v722
        %v783 = vadd.f32 %v670, %v726
        %v784 = vadd.f32 %v671, %v730
        %v785 = vadd.f32 %v672, %v722
        %v786 = vadd.f32 %v673, %v726
        %v787 = vadd.f32 %v674, %v730
        %v788 = vadd.f32 %v675, %v722
        %v789 = vadd.f32 %v676, %v726
        %v790 = vadd.f32 %v677, %v730
        %v791 = vadd.f32 %v678, %v722
        %v792 = vadd.f32 %v679, %v726
        %v793 = vadd.f32 %v680, %v730
        %v794 = vadd.f32 %v681, %v722
        %v795 = vadd.f32 %v682, %v726
        %v796 = vadd.f32 %v683, %v730
        %v797 = vadd.f32 %v684, %v722
        %v798 = vadd.f32 %v685, %v726
        %v799 = vadd.f32 %v686, %v730
        %v800 = vadd.f32 %v687, %v722
        %v801 = vadd.f32 %v688, %v726
        %v802 = vadd.f32 %v689, %v730
        %v803 = vadd.f32 %v690, %v722
        %v804 = vadd.f32 %v691, %v726
        %v805 = vadd.f32 %v692, %v730
        %v806 = vadd.f32 %v693, %v722
        %v807 = vadd.f32 %v694, %v726
        %v808 = vadd.f32 %v695, %v730
        %v809 = vadd.f32 %v696, %v722
        %v810 = vadd.f32 %v697, %v726
        %v811 = vadd.f32 %v698, %v730
        %v812 = vadd.f32 %v699, %v722
        %v813 = vadd.f32 %v700, %v726
        %v814 = vadd.f32 %v701, %v730
        %v815 = vadd.f32 %v702, %v722
        %v816 = vadd.f32 %v703, %v726
        %v817 = vadd.f32 %v704, %v730
        %v818 = vadd.f32 %v705, %v722
        %v819 = vadd.f32 %v706, %v726
        %v820 = vadd.f32 %v707, %v730
        %v821 = vadd.f32 %v708, %v722
        %v822 = vadd.f32 %v709, %v726
        %v823 = vadd.f32 %v710, %v730
        %v824 = vadd.f32 %v711, %v722
        %v825 = vadd.f32 %v712, %v726
        %v826 = vadd.f32 %v713, %v730
        %v827 = vadd.f32 %v714, %v722
        %v828 = vadd.f32 %v715, %v726
        %v829 = vadd.f32 %v716, %v730
        %v830 = vld [vmem:[#allocation2] sm:$0xff]
        %v831 = vld [vmem:[#allocation2 + $0x8] sm:$0xff]
        %v832 = vld [vmem:[#allocation2 + $0x10] sm:$0xff]
        %v833 = vld [vmem:[#allocation2 + $0x18] sm:$0xff]
        %v834 = vld [vmem:[#allocation2 + $0x20] sm:$0xff]
        %v835 = vld [vmem:[#allocation2 + $0x28] sm:$0xff]
        %v836 = vld [vmem:[#allocation2 + $0x30] sm:$0xff]
        %v837 = vld [vmem:[#allocation2 + $0x38] sm:$0xff]
        %v838 = vld [vmem:[#allocation2 + $0x40] sm:$0xff]
        %v839 = vld [vmem:[#allocation2 + $0x48] sm:$0xff]
        %v840 = vld [vmem:[#allocation2 + $0x50] sm:$0xff]
        %v841 = vld [vmem:[#allocation2 + $0x58] sm:$0xff]
        %v842 = vld [vmem:[#allocation2 + $0x60] sm:$0xff]
        %v843 = vld [vmem:[#allocation2 + $0x68] sm:$0xff]
        %v844 = vld [vmem:[#allocation2 + $0x70] sm:$0xff]
        %v845 = vld [vmem:[#allocation2 + $0x78] sm:$0xff]
        %v846 = vld [vmem:[#allocation2 + $0x80] sm:$0xff]
        %v847 = vld [vmem:[#allocation2 + $0x88] sm:$0xff]
        %v848 = vld [vmem:[#allocation2 + $0x90] sm:$0xff]
        %v849 = vld [vmem:[#allocation2 + $0x98] sm:$0xff]
        %v850 = vld [vmem:[#allocation2 + $0xa0] sm:$0xff]
        %v851 = vld [vmem:[#allocation2 + $0xa8] sm:$0xff]
        %v852 = vld [vmem:[#allocation2 + $0xb0] sm:$0xff]
        %v853 = vld [vmem:[#allocation2 + $0xb8] sm:$0xff]
        %v854 = vld [vmem:[#allocation2 + $0xc0] sm:$0xff]
        %v855 = vld [vmem:[#allocation2 + $0xc8] sm:$0xff]
        %v856 = vld [vmem:[#allocation2 + $0xd0] sm:$0xff]
        %v857 = vld [vmem:[#allocation2 + $0xd8] sm:$0xff]
        %v858 = vld [vmem:[#allocation2 + $0xe0] sm:$0xff]
        %v859 = vld [vmem:[#allocation2 + $0xe8] sm:$0xff]
        %v860 = vld [vmem:[#allocation2 + $0xf0] sm:$0xff]
        %v861 = vld [vmem:[#allocation2 + $0xf8] sm:$0xff]
        %v862 = vpack.c.bf16 %v737, %v734
        %v863 = vpack.c.bf16 %v738, %v735
        %v864 = vpack.c.bf16 %v739, %v736
        %v865 = vpack.c.bf16 %v743, %v740
        %v866 = vpack.c.bf16 %v744, %v741
        %v867 = vpack.c.bf16 %v745, %v742
        %v868 = vpack.c.bf16 %v749, %v746
        %v869 = vpack.c.bf16 %v750, %v747
        %v870 = vpack.c.bf16 %v751, %v748
        %v871 = vpack.c.bf16 %v755, %v752
        %v872 = vpack.c.bf16 %v756, %v753
        %v873 = vpack.c.bf16 %v757, %v754
        %v874 = vpack.c.bf16 %v761, %v758
        %v875 = vpack.c.bf16 %v762, %v759
        %v876 = vpack.c.bf16 %v763, %v760
        %v877 = vpack.c.bf16 %v767, %v764
        %v878 = vpack.c.bf16 %v768, %v765
        %v879 = vpack.c.bf16 %v769, %v766
        %v880 = vpack.c.bf16 %v773, %v770
        %v881 = vpack.c.bf16 %v774, %v771
        %v882 = vpack.c.bf16 %v775, %v772
        %v883 = vpack.c.bf16 %v779, %v776
        %v884 = vpack.c.bf16 %v780, %v777
        %v885 = vpack.c.bf16 %v781, %v778
        %v886 = vpack.c.bf16 %v785, %v782
        %v887 = vpack.c.bf16 %v786, %v783
        %v888 = vpack.c.bf16 %v787, %v784
        %v889 = vpack.c.bf16 %v791, %v788
        %v890 = vpack.c.bf16 %v792, %v789
        %v891 = vpack.c.bf16 %v793, %v790
        %v892 = vpack.c.bf16 %v797, %v794
        %v893 = vpack.c.bf16 %v798, %v795
        %v894 = vpack.c.bf16 %v799, %v796
        %v895 = vpack.c.bf16 %v803, %v800
        %v896 = vpack.c.bf16 %v804, %v801
        %v897 = vpack.c.bf16 %v805, %v802
        %v898 = vpack.c.bf16 %v809, %v806
        %v899 = vpack.c.bf16 %v810, %v807
        %v900 = vpack.c.bf16 %v811, %v808
        %v901 = vpack.c.bf16 %v815, %v812
        %v902 = vpack.c.bf16 %v816, %v813
        %v903 = vpack.c.bf16 %v817, %v814
        %v904 = vpack.c.bf16 %v821, %v818
        %v905 = vpack.c.bf16 %v822, %v819
        %v906 = vpack.c.bf16 %v823, %v820
        %v907 = vpack.c.bf16 %v827, %v824
        %v908 = vpack.c.bf16 %v828, %v825
        %v909 = vpack.c.bf16 %v829, %v826
        %v910 = vld [vmem:[%s379] sm:$0xf]
        %v911 = vld [vmem:[%s379 + $0x4] sm:$0xf]
        %v912 = vld [vmem:[%s379 + $0x8] sm:$0xf]
        %v913 = vld [vmem:[%s379 + $0xc] sm:$0xf]
        %v914 = vld [vmem:[%s379 + $0x10] sm:$0xf]
        %v915 = vld [vmem:[%s379 + $0x14] sm:$0xf]
        %v916 = vld [vmem:[%s379 + $0x18] sm:$0xf]
        %v917 = vld [vmem:[%s379 + $0x1c] sm:$0xf]
        %v918 = vld [vmem:[%s379 + $0x20] sm:$0xf]
        %v919 = vld [vmem:[%s379 + $0x24] sm:$0xf]
        %v920 = vld [vmem:[%s379 + $0x28] sm:$0xf]
        %v921 = vld [vmem:[%s379 + $0x2c] sm:$0xf]
        %v922 = vld [vmem:[%s379 + $0x30] sm:$0xf]
        %v923 = vld [vmem:[%s379 + $0x34] sm:$0xf]
        %v924 = vld [vmem:[%s379 + $0x38] sm:$0xf]
        %v925 = vld [vmem:[%s379 + $0x3c] sm:$0xf]
        %v926 = vld [vmem:[%s379 + $0x40] sm:$0xf]
        %v927 = vld [vmem:[%s379 + $0x44] sm:$0xf]
        %v928 = vld [vmem:[%s379 + $0x48] sm:$0xf]
        %v929 = vld [vmem:[%s379 + $0x4c] sm:$0xf]
        %v930 = vld [vmem:[%s379 + $0x50] sm:$0xf]
        %v931 = vld [vmem:[%s379 + $0x54] sm:$0xf]
        %v932 = vld [vmem:[%s379 + $0x58] sm:$0xf]
        %v933 = vld [vmem:[%s379 + $0x5c] sm:$0xf]
        %v934 = vld [vmem:[%s379 + $0x60] sm:$0xf]
        %v935 = vld [vmem:[%s379 + $0x64] sm:$0xf]
        %v936 = vld [vmem:[%s379 + $0x68] sm:$0xf]
        %v937 = vld [vmem:[%s379 + $0x6c] sm:$0xf]
        %v938 = vld [vmem:[%s379 + $0x70] sm:$0xf]
        %v939 = vld [vmem:[%s379 + $0x74] sm:$0xf]
        %v940 = vld [vmem:[%s379 + $0x78] sm:$0xf]
        %v941 = vld [vmem:[%s379 + $0x7c] sm:$0xf]
        %v942 = vld [vmem:[%s379 + $0x80] sm:$0xf]
        %v943 = vld [vmem:[%s379 + $0x84] sm:$0xf]
        %v944 = vld [vmem:[%s379 + $0x88] sm:$0xf]
        %v945 = vld [vmem:[%s379 + $0x8c] sm:$0xf]
        %v946 = vld [vmem:[%s379 + $0x90] sm:$0xf]
        %v947 = vld [vmem:[%s379 + $0x94] sm:$0xf]
        %v948 = vld [vmem:[%s379 + $0x98] sm:$0xf]
        %v949 = vld [vmem:[%s379 + $0x9c] sm:$0xf]
        %v950 = vld [vmem:[%s379 + $0xa0] sm:$0xf]
        %v951 = vld [vmem:[%s379 + $0xa4] sm:$0xf]
        %v952 = vld [vmem:[%s379 + $0xa8] sm:$0xf]
        %v953 = vld [vmem:[%s379 + $0xac] sm:$0xf]
        %v954 = vld [vmem:[%s379 + $0xb0] sm:$0xf]
        %v955 = vld [vmem:[%s379 + $0xb4] sm:$0xf]
        %v956 = vld [vmem:[%s379 + $0xb8] sm:$0xf]
        %v957 = vld [vmem:[%s379 + $0xbc] sm:$0xf]
        %v1006 = vunpack.c.l.b16 %v910
        %v1007 = vunpack.c.l.b16 %v911
        %v1008 = vunpack.c.l.b16 %v912
        %v1009 = vunpack.c.l.b16 %v913
        %v1010 = vunpack.c.l.b16 %v914
        %v1011 = vunpack.c.l.b16 %v915
        %v1012 = vunpack.c.l.b16 %v916
        %v1013 = vunpack.c.l.b16 %v917
        %v1014 = vunpack.c.l.b16 %v918
        %v1015 = vunpack.c.l.b16 %v919
        %v1016 = vunpack.c.l.b16 %v920
        %v1017 = vunpack.c.l.b16 %v921
        %v1018 = vunpack.c.l.b16 %v922
        %v1019 = vunpack.c.l.b16 %v923
        %v1020 = vunpack.c.l.b16 %v924
        %v1021 = vunpack.c.l.b16 %v925
        %v1022 = vunpack.c.l.b16 %v926
        %v1023 = vunpack.c.l.b16 %v927
        %v1024 = vunpack.c.l.b16 %v928
        %v1025 = vunpack.c.l.b16 %v929
        %v1026 = vunpack.c.l.b16 %v930
        %v1027 = vunpack.c.l.b16 %v931
        %v1028 = vunpack.c.l.b16 %v932
        %v1029 = vunpack.c.l.b16 %v933
        %v1030 = vunpack.c.l.b16 %v934
        %v1031 = vunpack.c.l.b16 %v935
        %v1032 = vunpack.c.l.b16 %v936
        %v1033 = vunpack.c.l.b16 %v937
        %v1034 = vunpack.c.l.b16 %v938
        %v1035 = vunpack.c.l.b16 %v939
        %v1036 = vunpack.c.l.b16 %v940
        %v1037 = vunpack.c.l.b16 %v941
        %v1038 = vunpack.c.l.b16 %v942
        %v1039 = vunpack.c.l.b16 %v943
        %v1040 = vunpack.c.l.b16 %v944
        %v1041 = vunpack.c.l.b16 %v945
        %v1042 = vunpack.c.l.b16 %v946
        %v1043 = vunpack.c.l.b16 %v947
        %v1044 = vunpack.c.l.b16 %v948
        %v1045 = vunpack.c.l.b16 %v949
        %v1046 = vunpack.c.l.b16 %v950
        %v1047 = vunpack.c.l.b16 %v951
        %v1048 = vunpack.c.l.b16 %v952
        %v1049 = vunpack.c.l.b16 %v953
        %v1050 = vunpack.c.l.b16 %v954
        %v1051 = vunpack.c.l.b16 %v955
        %v1052 = vunpack.c.l.b16 %v956
        %v1053 = vunpack.c.l.b16 %v957
        %v1054 = vpack.c.b16 %v1007, %v1006
        %v1055 = vpack.c.b16 %v1009, %v1008
        %v1056 = vpack.c.b16 %v1011, %v1010
        %v1057 = vpack.c.b16 %v1013, %v1012
        %v1058 = vpack.c.b16 %v1015, %v1014
        %v1059 = vpack.c.b16 %v1017, %v1016
        %v1060 = vpack.c.b16 %v1019, %v1018
        %v1061 = vpack.c.b16 %v1021, %v1020
        %v1062 = vpack.c.b16 %v1023, %v1022
        %v1063 = vpack.c.b16 %v1025, %v1024
        %v1064 = vpack.c.b16 %v1027, %v1026
        %v1065 = vpack.c.b16 %v1029, %v1028
        %v1066 = vpack.c.b16 %v1031, %v1030
        %v1067 = vpack.c.b16 %v1033, %v1032
        %v1068 = vpack.c.b16 %v1035, %v1034
        %v1069 = vpack.c.b16 %v1037, %v1036
        %v1070 = vpack.c.b16 %v1039, %v1038
        %v1071 = vpack.c.b16 %v1041, %v1040
        %v1072 = vpack.c.b16 %v1043, %v1042
        %v1073 = vpack.c.b16 %v1045, %v1044
        %v1074 = vpack.c.b16 %v1047, %v1046
        %v1075 = vpack.c.b16 %v1049, %v1048
        %v1076 = vpack.c.b16 %v1051, %v1050
        %v1077 = vpack.c.b16 %v1053, %v1052
        %1102 = vmatprep.subr.bf16.mxu0 0
        %1103 = vmatpush1.bf16.msra.mxu0 %v1054
        %1104 = vmatprep.subr.bf16.mxu0 0
        %1105 = vmatpush1.bf16.msra.mxu0 %v1055
        %1106 = vmatprep.subr.bf16.mxu0 0
        %1107 = vmatpush1.bf16.msra.mxu0 %v1056
        %1108 = vmatprep.subr.bf16.mxu0 0
        %1109 = vmatpush1.bf16.msra.mxu0 %v1057
        %1110 = vmatprep.subr.bf16.mxu0 0
        %1111 = vmatpush1.bf16.msra.mxu0 %v1058
        %1112 = vmatprep.subr.bf16.mxu0 0
        %1113 = vmatpush1.bf16.msra.mxu0 %v1059
        %1114 = vmatprep.subr.bf16.mxu0 0
        %1115 = vmatpush1.bf16.msra.mxu0 %v1060
        %1116 = vmatprep.subr.bf16.mxu0 0
        %1117 = vmatpush1.bf16.msra.mxu0 %v1061
        %1118 = vmatprep.subr.bf16.mxu0 0
        %1119 = vmatpush1.bf16.msra.mxu0 %v1062
        %1120 = vmatprep.subr.bf16.mxu0 0
        %1121 = vmatpush1.bf16.msra.mxu0 %v1063
        %1122 = vmatprep.subr.bf16.mxu0 0
        %1123 = vmatpush1.bf16.msra.mxu0 %v1064
        %1124 = vmatprep.subr.bf16.mxu0 0
        %1125 = vmatpush1.bf16.msra.mxu0 %v1065
        %1126 = vmatprep.subr.bf16.mxu0 0
        %1127 = vmatpush1.bf16.msra.mxu0 %v1066
        %1128 = vmatprep.subr.bf16.mxu0 0
        %1129 = vmatpush1.bf16.msra.mxu0 %v1067
        %1130 = vmatprep.subr.bf16.mxu0 0
        %1131 = vmatpush1.bf16.msra.mxu0 %v1068
        %1132 = vmatprep.subr.bf16.mxu0 0
        %1133 = vmatpush1.bf16.msra.mxu0 %v1069
        %1134 = vmatprep.mubr.bf16.mxu0 %v863
        %1135 = vmatmul.mubr.bf16.gmra.mrb[0].mxu0 %v862
        %v1136 = vpop.f32.mrb[0].mxu0
        %v1137 = vadd.f32 0.0, %v1136
        %v1138 = vpop.f32.mrb[0].mxu0
        %v1139 = vpop.f32.mrb[0].mxu0
        %v1140 = vadd.f32 0.0, %v1139
        %v1141 = vpop.f32.mrb[0].mxu0
        %1142 = vmatprep.mubr.bf16.mxu0 %v866
        %1143 = vmatmul.mubr.bf16.gmra.mrb[0].mxu0 %v865
        %v1144 = vpop.f32.mrb[0].mxu0
        %v1145 = vadd.f32 0.0, %v1144
        %v1146 = vpop.f32.mrb[0].mxu0
        %v1147 = vpop.f32.mrb[0].mxu0
        %v1148 = vadd.f32 0.0, %v1147
        %v1149 = vpop.f32.mrb[0].mxu0
        %1150 = vmatprep.mubr.bf16.mxu0 %v869
        %1151 = vmatmul.mubr.bf16.gmra.mrb[0].mxu0 %v868
        %v1152 = vpop.f32.mrb[0].mxu0
        %v1153 = vadd.f32 0.0, %v1152
        %v1154 = vpop.f32.mrb[0].mxu0
        %v1155 = vpop.f32.mrb[0].mxu0
        %v1156 = vadd.f32 0.0, %v1155
        %v1157 = vpop.f32.mrb[0].mxu0
        %1158 = vmatprep.mubr.bf16.mxu0 %v872
        %1159 = vmatmul.mubr.bf16.gmra.mrb[0].mxu0 %v871
        %v1160 = vpop.f32.mrb[0].mxu0
        %v1161 = vadd.f32 0.0, %v1160
        %v1162 = vpop.f32.mrb[0].mxu0
        %v1163 = vpop.f32.mrb[0].mxu0
        %v1164 = vadd.f32 0.0, %v1163
        %v1165 = vpop.f32.mrb[0].mxu0
        %1166 = vmatprep.mubr.bf16.mxu0 %v875
        %1167 = vmatmul.mubr.bf16.gmra.mrb[0].mxu0 %v874
        %v1168 = vpop.f32.mrb[0].mxu0
        %v1169 = vadd.f32 0.0, %v1168
        %v1170 = vpop.f32.mrb[0].mxu0
        %v1171 = vpop.f32.mrb[0].mxu0
        %v1172 = vadd.f32 0.0, %v1171
        %v1173 = vpop.f32.mrb[0].mxu0
        %1174 = vmatprep.mubr.bf16.mxu0 %v878
        %1175 = vmatmul.mubr.bf16.gmra.mrb[0].mxu0 %v877
        %v1176 = vpop.f32.mrb[0].mxu0
        %v1177 = vadd.f32 0.0, %v1176
        %v1178 = vpop.f32.mrb[0].mxu0
        %v1179 = vpop.f32.mrb[0].mxu0
        %v1180 = vadd.f32 0.0, %v1179
        %v1181 = vpop.f32.mrb[0].mxu0
        %1182 = vmatprep.mubr.bf16.mxu0 %v881
        %1183 = vmatmul.mubr.bf16.gmra.mrb[0].mxu0 %v880
        %v1184 = vpop.f32.mrb[0].mxu0
        %v1185 = vadd.f32 0.0, %v1184
        %v1186 = vpop.f32.mrb[0].mxu0
        %v1187 = vpop.f32.mrb[0].mxu0
        %v1188 = vadd.f32 0.0, %v1187
        %v1189 = vpop.f32.mrb[0].mxu0
        %1190 = vmatprep.mubr.bf16.mxu0 %v884
        %1191 = vmatmul.mubr.bf16.gmra.mrb[0].mxu0 %v883
        %v1192 = vpop.f32.mrb[0].mxu0
        %v1193 = vadd.f32 0.0, %v1192
        %v1194 = vpop.f32.mrb[0].mxu0
        %v1195 = vpop.f32.mrb[0].mxu0
        %v1196 = vadd.f32 0.0, %v1195
        %v1197 = vpop.f32.mrb[0].mxu0
        %1198 = vmatprep.mubr.bf16.mxu0 %v887
        %1199 = vmatmul.mubr.bf16.gmra.mrb[0].mxu0 %v886
        %v1200 = vpop.f32.mrb[0].mxu0
        %v1201 = vadd.f32 0.0, %v1200
        %v1202 = vpop.f32.mrb[0].mxu0
        %v1203 = vpop.f32.mrb[0].mxu0
        %v1204 = vadd.f32 0.0, %v1203
        %v1205 = vpop.f32.mrb[0].mxu0
        %1206 = vmatprep.mubr.bf16.mxu0 %v890
        %1207 = vmatmul.mubr.bf16.gmra.mrb[0].mxu0 %v889
        %v1208 = vpop.f32.mrb[0].mxu0
        %v1209 = vadd.f32 0.0, %v1208
        %v1210 = vpop.f32.mrb[0].mxu0
        %v1211 = vpop.f32.mrb[0].mxu0
        %v1212 = vadd.f32 0.0, %v1211
        %v1213 = vpop.f32.mrb[0].mxu0
        %1214 = vmatprep.mubr.bf16.mxu0 %v893
        %1215 = vmatmul.mubr.bf16.gmra.mrb[0].mxu0 %v892
        %v1216 = vpop.f32.mrb[0].mxu0
        %v1217 = vadd.f32 0.0, %v1216
        %v1218 = vpop.f32.mrb[0].mxu0
        %v1219 = vpop.f32.mrb[0].mxu0
        %v1220 = vadd.f32 0.0, %v1219
        %v1221 = vpop.f32.mrb[0].mxu0
        %1222 = vmatprep.mubr.bf16.mxu0 %v896
        %1223 = vmatmul.mubr.bf16.gmra.mrb[0].mxu0 %v895
        %v1224 = vpop.f32.mrb[0].mxu0
        %v1225 = vadd.f32 0.0, %v1224
        %v1226 = vpop.f32.mrb[0].mxu0
        %v1227 = vpop.f32.mrb[0].mxu0
        %v1228 = vadd.f32 0.0, %v1227
        %v1229 = vpop.f32.mrb[0].mxu0
        %1230 = vmatprep.mubr.bf16.mxu0 %v899
        %1231 = vmatmul.mubr.bf16.gmra.mrb[0].mxu0 %v898
        %v1232 = vpop.f32.mrb[0].mxu0
        %v1233 = vadd.f32 0.0, %v1232
        %v1234 = vpop.f32.mrb[0].mxu0
        %v1235 = vpop.f32.mrb[0].mxu0
        %v1236 = vadd.f32 0.0, %v1235
        %v1237 = vpop.f32.mrb[0].mxu0
        %1238 = vmatprep.mubr.bf16.mxu0 %v902
        %1239 = vmatmul.mubr.bf16.gmra.mrb[0].mxu0 %v901
        %v1240 = vpop.f32.mrb[0].mxu0
        %v1241 = vadd.f32 0.0, %v1240
        %v1242 = vpop.f32.mrb[0].mxu0
        %v1243 = vpop.f32.mrb[0].mxu0
        %v1244 = vadd.f32 0.0, %v1243
        %v1245 = vpop.f32.mrb[0].mxu0
        %1246 = vmatprep.mubr.bf16.mxu0 %v905
        %1247 = vmatmul.mubr.bf16.gmra.mrb[0].mxu0 %v904
        %v1248 = vpop.f32.mrb[0].mxu0
        %v1249 = vadd.f32 0.0, %v1248
        %v1250 = vpop.f32.mrb[0].mxu0
        %v1251 = vpop.f32.mrb[0].mxu0
        %v1252 = vadd.f32 0.0, %v1251
        %v1253 = vpop.f32.mrb[0].mxu0
        %1254 = vmatprep.mubr.bf16.mxu0 %v908
        %1255 = vmatmul.mubr.bf16.gmra.mrb[0].mxu0 %v907
        %v1256 = vpop.f32.mrb[0].mxu0
        %v1257 = vadd.f32 0.0, %v1256
        %v1258 = vpop.f32.mrb[0].mxu0
        %v1259 = vpop.f32.mrb[0].mxu0
        %v1260 = vadd.f32 0.0, %v1259
        %v1261 = vpop.f32.mrb[0].mxu0
        %1262 = vdwg.mxu0
        %1263 = vmatprep.subr.bf16.mxu0 0
        %1264 = vmatpush1.bf16.msra.mxu0 %v1070
        %1265 = vmatprep.subr.bf16.mxu0 0
        %1266 = vmatpush1.bf16.msra.mxu0 %v1071
        %1267 = vmatprep.subr.bf16.mxu0 0
        %1268 = vmatpush1.bf16.msra.mxu0 %v1072
        %1269 = vmatprep.subr.bf16.mxu0 0
        %1270 = vmatpush1.bf16.msra.mxu0 %v1073
        %1271 = vmatprep.subr.bf16.mxu0 0
        %1272 = vmatpush1.bf16.msra.mxu0 %v1074
        %1273 = vmatprep.subr.bf16.mxu0 0
        %1274 = vmatpush1.bf16.msra.mxu0 %v1075
        %1275 = vmatprep.subr.bf16.mxu0 0
        %1276 = vmatpush1.bf16.msra.mxu0 %v1076
        %1277 = vmatprep.subr.bf16.mxu0 0
        %1278 = vmatpush1.bf16.msra.mxu0 %v1077
        %1279 = vmatprep.subr.bf16.mxu0 0
        %1280 = vmatpush1.bf16.msra.mxu0 0
        %1281 = vmatprep.subr.bf16.mxu0 0
        %1282 = vmatpush1.bf16.msra.mxu0 0
        %1283 = vmatprep.subr.bf16.mxu0 0
        %1284 = vmatpush1.bf16.msra.mxu0 0
        %1285 = vmatprep.subr.bf16.mxu0 0
        %1286 = vmatpush1.bf16.msra.mxu0 0
        %1287 = vmatprep.subr.bf16.mxu0 0
        %1288 = vmatpush1.bf16.msra.mxu0 0
        %1289 = vmatprep.subr.bf16.mxu0 0
        %1290 = vmatpush1.bf16.msra.mxu0 0
        %1291 = vmatprep.subr.bf16.mxu0 0
        %1292 = vmatpush1.bf16.msra.mxu0 0
        %1293 = vmatprep.subr.bf16.mxu0 0
        %1294 = vmatpush1.bf16.msra.mxu0 0
        %1295 = vmatprep.mubr.bf16.mxu0 0
        %1296 = vmatmul.mubr.bf16.gmra.mrb[0].mxu0 %v864
        %v1297 = vpop.f32.mrb[0].mxu0
        %v1298 = vadd.f32 %v1137, %v1297
        %v1299 = vpop.f32.mrb[0].mxu0
        %v1300 = vpop.f32.mrb[0].mxu0
        %v1301 = vadd.f32 %v1140, %v1300
        %v1302 = vpop.f32.mrb[0].mxu0
        %1303 = vmatprep.mubr.bf16.mxu0 0
        %1304 = vmatmul.mubr.bf16.gmra.mrb[0].mxu0 %v867
        %v1305 = vpop.f32.mrb[0].mxu0
        %v1306 = vadd.f32 %v1145, %v1305
        %v1307 = vpop.f32.mrb[0].mxu0
        %v1308 = vpop.f32.mrb[0].mxu0
        %v1309 = vadd.f32 %v1148, %v1308
        %v1310 = vpop.f32.mrb[0].mxu0
        %1311 = vmatprep.mubr.bf16.mxu0 0
        %1312 = vmatmul.mubr.bf16.gmra.mrb[0].mxu0 %v870
        %v1313 = vpop.f32.mrb[0].mxu0
        %v1314 = vadd.f32 %v1153, %v1313
        %v1315 = vpop.f32.mrb[0].mxu0
        %v1316 = vpop.f32.mrb[0].mxu0
        %v1317 = vadd.f32 %v1156, %v1316
        %v1318 = vpop.f32.mrb[0].mxu0
        %1319 = vmatprep.mubr.bf16.mxu0 0
        %1320 = vmatmul.mubr.bf16.gmra.mrb[0].mxu0 %v873
        %v1321 = vpop.f32.mrb[0].mxu0
        %v1322 = vadd.f32 %v1161, %v1321
        %v1323 = vpop.f32.mrb[0].mxu0
        %v1324 = vpop.f32.mrb[0].mxu0
        %v1325 = vadd.f32 %v1164, %v1324
        %v1326 = vpop.f32.mrb[0].mxu0
        %1327 = vmatprep.mubr.bf16.mxu0 0
        %1328 = vmatmul.mubr.bf16.gmra.mrb[0].mxu0 %v876
        %v1329 = vpop.f32.mrb[0].mxu0
        %v1330 = vadd.f32 %v1169, %v1329
        %v1331 = vpop.f32.mrb[0].mxu0
        %v1332 = vpop.f32.mrb[0].mxu0
        %v1333 = vadd.f32 %v1172, %v1332
        %v1334 = vpop.f32.mrb[0].mxu0
        %1335 = vmatprep.mubr.bf16.mxu0 0
        %1336 = vmatmul.mubr.bf16.gmra.mrb[0].mxu0 %v879
        %v1337 = vpop.f32.mrb[0].mxu0
        %v1338 = vadd.f32 %v1177, %v1337
        %v1339 = vpop.f32.mrb[0].mxu0
        %v1340 = vpop.f32.mrb[0].mxu0
        %v1341 = vadd.f32 %v1180, %v1340
        %v1342 = vpop.f32.mrb[0].mxu0
        %1343 = vmatprep.mubr.bf16.mxu0 0
        %1344 = vmatmul.mubr.bf16.gmra.mrb[0].mxu0 %v882
        %v1345 = vpop.f32.mrb[0].mxu0
        %v1346 = vadd.f32 %v1185, %v1345
        %v1347 = vpop.f32.mrb[0].mxu0
        %v1348 = vpop.f32.mrb[0].mxu0
        %v1349 = vadd.f32 %v1188, %v1348
        %v1350 = vpop.f32.mrb[0].mxu0
        %1351 = vmatprep.mubr.bf16.mxu0 0
        %1352 = vmatmul.mubr.bf16.gmra.mrb[0].mxu0 %v885
        %v1353 = vpop.f32.mrb[0].mxu0
        %v1354 = vadd.f32 %v1193, %v1353
        %v1355 = vpop.f32.mrb[0].mxu0
        %v1356 = vpop.f32.mrb[0].mxu0
        %v1357 = vadd.f32 %v1196, %v1356
        %v1358 = vpop.f32.mrb[0].mxu0
        %1359 = vmatprep.mubr.bf16.mxu0 0
        %1360 = vmatmul.mubr.bf16.gmra.mrb[0].mxu0 %v888
        %v1361 = vpop.f32.mrb[0].mxu0
        %v1362 = vadd.f32 %v1201, %v1361
        %v1363 = vpop.f32.mrb[0].mxu0
        %v1364 = vpop.f32.mrb[0].mxu0
        %v1365 = vadd.f32 %v1204, %v1364
        %v1366 = vpop.f32.mrb[0].mxu0
        %1367 = vmatprep.mubr.bf16.mxu0 0
        %1368 = vmatmul.mubr.bf16.gmra.mrb[0].mxu0 %v891
        %v1369 = vpop.f32.mrb[0].mxu0
        %v1370 = vadd.f32 %v1209, %v1369
        %v1371 = vpop.f32.mrb[0].mxu0
        %v1372 = vpop.f32.mrb[0].mxu0
        %v1373 = vadd.f32 %v1212, %v1372
        %v1374 = vpop.f32.mrb[0].mxu0
        %1375 = vmatprep.mubr.bf16.mxu0 0
        %1376 = vmatmul.mubr.bf16.gmra.mrb[0].mxu0 %v894
        %v1377 = vpop.f32.mrb[0].mxu0
        %v1378 = vadd.f32 %v1217, %v1377
        %v1379 = vpop.f32.mrb[0].mxu0
        %v1380 = vpop.f32.mrb[0].mxu0
        %v1381 = vadd.f32 %v1220, %v1380
        %v1382 = vpop.f32.mrb[0].mxu0
        %1383 = vmatprep.mubr.bf16.mxu0 0
        %1384 = vmatmul.mubr.bf16.gmra.mrb[0].mxu0 %v897
        %v1385 = vpop.f32.mrb[0].mxu0
        %v1386 = vadd.f32 %v1225, %v1385
        %v1387 = vpop.f32.mrb[0].mxu0
        %v1388 = vpop.f32.mrb[0].mxu0
        %v1389 = vadd.f32 %v1228, %v1388
        %v1390 = vpop.f32.mrb[0].mxu0
        %1391 = vmatprep.mubr.bf16.mxu0 0
        %1392 = vmatmul.mubr.bf16.gmra.mrb[0].mxu0 %v900
        %v1393 = vpop.f32.mrb[0].mxu0
        %v1394 = vadd.f32 %v1233, %v1393
        %v1395 = vpop.f32.mrb[0].mxu0
        %v1396 = vpop.f32.mrb[0].mxu0
        %v1397 = vadd.f32 %v1236, %v1396
        %v1398 = vpop.f32.mrb[0].mxu0
        %1399 = vmatprep.mubr.bf16.mxu0 0
        %1400 = vmatmul.mubr.bf16.gmra.mrb[0].mxu0 %v903
        %v1401 = vpop.f32.mrb[0].mxu0
        %v1402 = vadd.f32 %v1241, %v1401
        %v1403 = vpop.f32.mrb[0].mxu0
        %v1404 = vpop.f32.mrb[0].mxu0
        %v1405 = vadd.f32 %v1244, %v1404
        %v1406 = vpop.f32.mrb[0].mxu0
        %1407 = vmatprep.mubr.bf16.mxu0 0
        %1408 = vmatmul.mubr.bf16.gmra.mrb[0].mxu0 %v906
        %v1409 = vpop.f32.mrb[0].mxu0
        %v1410 = vadd.f32 %v1249, %v1409
        %v1411 = vpop.f32.mrb[0].mxu0
        %v1412 = vpop.f32.mrb[0].mxu0
        %v1413 = vadd.f32 %v1252, %v1412
        %v1414 = vpop.f32.mrb[0].mxu0
        %1415 = vmatprep.mubr.bf16.mxu0 0
        %1416 = vmatmul.mubr.bf16.gmra.mrb[0].mxu0 %v909
        %v1417 = vpop.f32.mrb[0].mxu0
        %v1418 = vadd.f32 %v1257, %v1417
        %v1419 = vpop.f32.mrb[0].mxu0
        %v1420 = vpop.f32.mrb[0].mxu0
        %v1421 = vadd.f32 %v1260, %v1420
        %v1422 = vpop.f32.mrb[0].mxu0
        %1423 = vdwg.mxu0
        %v1424 = vadd.f32 %v830, %v1298
        %v1425 = vadd.f32 %v831, %v1301
        %v1426 = vadd.f32 %v832, %v1306
        %v1427 = vadd.f32 %v833, %v1309
        %v1428 = vadd.f32 %v834, %v1314
        %v1429 = vadd.f32 %v835, %v1317
        %v1430 = vadd.f32 %v836, %v1322
        %v1431 = vadd.f32 %v837, %v1325
        %v1432 = vadd.f32 %v838, %v1330
        %v1433 = vadd.f32 %v839, %v1333
        %v1434 = vadd.f32 %v840, %v1338
        %v1435 = vadd.f32 %v841, %v1341
        %v1436 = vadd.f32 %v842, %v1346
        %v1437 = vadd.f32 %v843, %v1349
        %v1438 = vadd.f32 %v844, %v1354
        %v1439 = vadd.f32 %v845, %v1357
        %v1440 = vadd.f32 %v846, %v1362
        %v1441 = vadd.f32 %v847, %v1365
        %v1442 = vadd.f32 %v848, %v1370
        %v1443 = vadd.f32 %v849, %v1373
        %v1444 = vadd.f32 %v850, %v1378
        %v1445 = vadd.f32 %v851, %v1381
        %v1446 = vadd.f32 %v852, %v1386
        %v1447 = vadd.f32 %v853, %v1389
        %v1448 = vadd.f32 %v854, %v1394
        %v1449 = vadd.f32 %v855, %v1397
        %v1450 = vadd.f32 %v856, %v1402
        %v1451 = vadd.f32 %v857, %v1405
        %v1452 = vadd.f32 %v858, %v1410
        %v1453 = vadd.f32 %v859, %v1413
        %v1454 = vadd.f32 %v860, %v1418
        %v1455 = vadd.f32 %v861, %v1421
        %vm1456 = vcmask 523264
        %1457 = vst.msk [vmem:[#allocation2] sm:$0xff] %vm1456, %v1424
        %1458 = vst.msk [vmem:[#allocation2 + $0x8] sm:$0xff] %vm1456, %v1425
        %1459 = vst.msk [vmem:[#allocation2 + $0x10] sm:$0xff] %vm1456, %v1426
        %1460 = vst.msk [vmem:[#allocation2 + $0x18] sm:$0xff] %vm1456, %v1427
        %1461 = vst.msk [vmem:[#allocation2 + $0x20] sm:$0xff] %vm1456, %v1428
        %1462 = vst.msk [vmem:[#allocation2 + $0x28] sm:$0xff] %vm1456, %v1429
        %1463 = vst.msk [vmem:[#allocation2 + $0x30] sm:$0xff] %vm1456, %v1430
        %1464 = vst.msk [vmem:[#allocation2 + $0x38] sm:$0xff] %vm1456, %v1431
        %1465 = vst.msk [vmem:[#allocation2 + $0x40] sm:$0xff] %vm1456, %v1432
        %1466 = vst.msk [vmem:[#allocation2 + $0x48] sm:$0xff] %vm1456, %v1433
        %1467 = vst.msk [vmem:[#allocation2 + $0x50] sm:$0xff] %vm1456, %v1434
        %1468 = vst.msk [vmem:[#allocation2 + $0x58] sm:$0xff] %vm1456, %v1435
        %1469 = vst.msk [vmem:[#allocation2 + $0x60] sm:$0xff] %vm1456, %v1436
        %1470 = vst.msk [vmem:[#allocation2 + $0x68] sm:$0xff] %vm1456, %v1437
        %1471 = vst.msk [vmem:[#allocation2 + $0x70] sm:$0xff] %vm1456, %v1438
        %1472 = vst.msk [vmem:[#allocation2 + $0x78] sm:$0xff] %vm1456, %v1439
        %1473 = vst.msk [vmem:[#allocation2 + $0x80] sm:$0xff] %vm1456, %v1440
        %1474 = vst.msk [vmem:[#allocation2 + $0x88] sm:$0xff] %vm1456, %v1441
        %1475 = vst.msk [vmem:[#allocation2 + $0x90] sm:$0xff] %vm1456, %v1442
        %1476 = vst.msk [vmem:[#allocation2 + $0x98] sm:$0xff] %vm1456, %v1443
        %1477 = vst.msk [vmem:[#allocation2 + $0xa0] sm:$0xff] %vm1456, %v1444
        %1478 = vst.msk [vmem:[#allocation2 + $0xa8] sm:$0xff] %vm1456, %v1445
        %1479 = vst.msk [vmem:[#allocation2 + $0xb0] sm:$0xff] %vm1456, %v1446
        %1480 = vst.msk [vmem:[#allocation2 + $0xb8] sm:$0xff] %vm1456, %v1447
        %1481 = vst.msk [vmem:[#allocation2 + $0xc0] sm:$0xff] %vm1456, %v1448
        %1482 = vst.msk [vmem:[#allocation2 + $0xc8] sm:$0xff] %vm1456, %v1449
        %1483 = vst.msk [vmem:[#allocation2 + $0xd0] sm:$0xff] %vm1456, %v1450
        %1484 = vst.msk [vmem:[#allocation2 + $0xd8] sm:$0xff] %vm1456, %v1451
        %1485 = vst.msk [vmem:[#allocation2 + $0xe0] sm:$0xff] %vm1456, %v1452
        %1486 = vst.msk [vmem:[#allocation2 + $0xe8] sm:$0xff] %vm1456, %v1453
        %1487 = vst.msk [vmem:[#allocation2 + $0xf0] sm:$0xff] %vm1456, %v1454
        %1488 = vst.msk [vmem:[#allocation2 + $0xf8] sm:$0xff] %vm1456, %v1455
        // Predicated region
        $region53: #{tpu_custom_call.1} parent=43 // pred_check
          %p1489 = pneg %p407
        $region54: #{tpu_custom_call.1} parent=43 // pred_check_branch
          %1491 = sbr.rel (%p1489) target = $region56
        $region55: #{tpu_custom_call.1} parent=43 // pred_region
          %v1492 = vld [vmem:[#allocation2] sm:$0xff]
          %v1493 = vld [vmem:[#allocation2 + $0x8] sm:$0xff]
          %v1494 = vld [vmem:[#allocation2 + $0x10] sm:$0xff]
          %v1495 = vld [vmem:[#allocation2 + $0x18] sm:$0xff]
          %v1496 = vld [vmem:[#allocation2 + $0x20] sm:$0xff]
          %v1497 = vld [vmem:[#allocation2 + $0x28] sm:$0xff]
          %v1498 = vld [vmem:[#allocation2 + $0x30] sm:$0xff]
          %v1499 = vld [vmem:[#allocation2 + $0x38] sm:$0xff]
          %v1500 = vld [vmem:[#allocation2 + $0x40] sm:$0xff]
          %v1501 = vld [vmem:[#allocation2 + $0x48] sm:$0xff]
          %v1502 = vld [vmem:[#allocation2 + $0x50] sm:$0xff]
          %v1503 = vld [vmem:[#allocation2 + $0x58] sm:$0xff]
          %v1504 = vld [vmem:[#allocation2 + $0x60] sm:$0xff]
          %v1505 = vld [vmem:[#allocation2 + $0x68] sm:$0xff]
          %v1506 = vld [vmem:[#allocation2 + $0x70] sm:$0xff]
          %v1507 = vld [vmem:[#allocation2 + $0x78] sm:$0xff]
          %v1508 = vld [vmem:[#allocation2 + $0x80] sm:$0xff]
          %v1509 = vld [vmem:[#allocation2 + $0x88] sm:$0xff]
          %v1510 = vld [vmem:[#allocation2 + $0x90] sm:$0xff]
          %v1511 = vld [vmem:[#allocation2 + $0x98] sm:$0xff]
          %v1512 = vld [vmem:[#allocation2 + $0xa0] sm:$0xff]
          %v1513 = vld [vmem:[#allocation2 + $0xa8] sm:$0xff]
          %v1514 = vld [vmem:[#allocation2 + $0xb0] sm:$0xff]
          %v1515 = vld [vmem:[#allocation2 + $0xb8] sm:$0xff]
          %v1516 = vld [vmem:[#allocation2 + $0xc0] sm:$0xff]
          %v1517 = vld [vmem:[#allocation2 + $0xc8] sm:$0xff]
          %v1518 = vld [vmem:[#allocation2 + $0xd0] sm:$0xff]
          %v1519 = vld [vmem:[#allocation2 + $0xd8] sm:$0xff]
          %v1520 = vld [vmem:[#allocation2 + $0xe0] sm:$0xff]
          %v1521 = vld [vmem:[#allocation2 + $0xe8] sm:$0xff]
          %v1522 = vld [vmem:[#allocation2 + $0xf0] sm:$0xff]
          %v1523 = vld [vmem:[#allocation2 + $0xf8] sm:$0xff]
          %v1524 = vld [vmem:[%s393] sm:$0x1]
          %v1526 = vlaneseq
          %v1527 = vshrl.u32 %v1526, 7
          %v1528 = vsub.s32 0, %v1527
          %v1529 = vrot.slane %v1524, %v1528
          %v1531 = vmul.f32 %v1492, %v1529
          %v1532 = vmul.f32 %v1493, %v1529
          %v1533 = vmul.f32 %v1494, %v1529
          %v1534 = vmul.f32 %v1495, %v1529
          %v1535 = vmul.f32 %v1496, %v1529
          %v1536 = vmul.f32 %v1497, %v1529
          %v1537 = vmul.f32 %v1498, %v1529
          %v1538 = vmul.f32 %v1499, %v1529
          %v1539 = vmul.f32 %v1500, %v1529
          %v1540 = vmul.f32 %v1501, %v1529
          %v1541 = vmul.f32 %v1502, %v1529
          %v1542 = vmul.f32 %v1503, %v1529
          %v1543 = vmul.f32 %v1504, %v1529
          %v1544 = vmul.f32 %v1505, %v1529
          %v1545 = vmul.f32 %v1506, %v1529
          %v1546 = vmul.f32 %v1507, %v1529
          %v1547 = vmul.f32 %v1508, %v1529
          %v1548 = vmul.f32 %v1509, %v1529
          %v1549 = vmul.f32 %v1510, %v1529
          %v1550 = vmul.f32 %v1511, %v1529
          %v1551 = vmul.f32 %v1512, %v1529
          %v1552 = vmul.f32 %v1513, %v1529
          %v1553 = vmul.f32 %v1514, %v1529
          %v1554 = vmul.f32 %v1515, %v1529
          %v1555 = vmul.f32 %v1516, %v1529
          %v1556 = vmul.f32 %v1517, %v1529
          %v1557 = vmul.f32 %v1518, %v1529
          %v1558 = vmul.f32 %v1519, %v1529
          %v1559 = vmul.f32 %v1520, %v1529
          %v1560 = vmul.f32 %v1521, %v1529
          %v1561 = vmul.f32 %v1522, %v1529
          %v1562 = vmul.f32 %v1523, %v1529
          %v1563 = vld [vmem:[%s396] sm:$0x1]
          %v1565 = vlaneseq
          %v1566 = vshrl.u32 %v1565, 7
          %v1567 = vsub.s32 0, %v1566
          %v1568 = vrot.slane %v1563, %v1567
          %v1570 = vadd.f32 %v1531, %v1568
          %v1571 = vadd.f32 %v1532, %v1568
          %v1572 = vadd.f32 %v1533, %v1568
          %v1573 = vadd.f32 %v1534, %v1568
          %v1574 = vadd.f32 %v1535, %v1568
          %v1575 = vadd.f32 %v1536, %v1568
          %v1576 = vadd.f32 %v1537, %v1568
          %v1577 = vadd.f32 %v1538, %v1568
          %v1578 = vadd.f32 %v1539, %v1568
          %v1579 = vadd.f32 %v1540, %v1568
          %v1580 = vadd.f32 %v1541, %v1568
          %v1581 = vadd.f32 %v1542, %v1568
          %v1582 = vadd.f32 %v1543, %v1568
          %v1583 = vadd.f32 %v1544, %v1568
          %v1584 = vadd.f32 %v1545, %v1568
          %v1585 = vadd.f32 %v1546, %v1568
          %v1586 = vadd.f32 %v1547, %v1568
          %v1587 = vadd.f32 %v1548, %v1568
          %v1588 = vadd.f32 %v1549, %v1568
          %v1589 = vadd.f32 %v1550, %v1568
          %v1590 = vadd.f32 %v1551, %v1568
          %v1591 = vadd.f32 %v1552, %v1568
          %v1592 = vadd.f32 %v1553, %v1568
          %v1593 = vadd.f32 %v1554, %v1568
          %v1594 = vadd.f32 %v1555, %v1568
          %v1595 = vadd.f32 %v1556, %v1568
          %v1596 = vadd.f32 %v1557, %v1568
          %v1597 = vadd.f32 %v1558, %v1568
          %v1598 = vadd.f32 %v1559, %v1568
          %v1599 = vadd.f32 %v1560, %v1568
          %v1600 = vadd.f32 %v1561, %v1568
          %v1601 = vadd.f32 %v1562, %v1568
          %v1602 = vmax.f32 %v1570, 0.0
          %v1603 = vmax.f32 %v1571, 0.0
          %v1604 = vmax.f32 %v1572, 0.0
          %v1605 = vmax.f32 %v1573, 0.0
          %v1606 = vmax.f32 %v1574, 0.0
          %v1607 = vmax.f32 %v1575, 0.0
          %v1608 = vmax.f32 %v1576, 0.0
          %v1609 = vmax.f32 %v1577, 0.0
          %v1610 = vmax.f32 %v1578, 0.0
          %v1611 = vmax.f32 %v1579, 0.0
          %v1612 = vmax.f32 %v1580, 0.0
          %v1613 = vmax.f32 %v1581, 0.0
          %v1614 = vmax.f32 %v1582, 0.0
          %v1615 = vmax.f32 %v1583, 0.0
          %v1616 = vmax.f32 %v1584, 0.0
          %v1617 = vmax.f32 %v1585, 0.0
          %v1618 = vmax.f32 %v1586, 0.0
          %v1619 = vmax.f32 %v1587, 0.0
          %v1620 = vmax.f32 %v1588, 0.0
          %v1621 = vmax.f32 %v1589, 0.0
          %v1622 = vmax.f32 %v1590, 0.0
          %v1623 = vmax.f32 %v1591, 0.0
          %v1624 = vmax.f32 %v1592, 0.0
          %v1625 = vmax.f32 %v1593, 0.0
          %v1626 = vmax.f32 %v1594, 0.0
          %v1627 = vmax.f32 %v1595, 0.0
          %v1628 = vmax.f32 %v1596, 0.0
          %v1629 = vmax.f32 %v1597, 0.0
          %v1630 = vmax.f32 %v1598, 0.0
          %v1631 = vmax.f32 %v1599, 0.0
          %v1632 = vmax.f32 %v1600, 0.0
          %v1633 = vmax.f32 %v1601, 0.0
          %v1634 = vpack.c.bf16 %v1603, %v1602
          %v1635 = vpack.c.bf16 %v1605, %v1604
          %v1636 = vpack.c.bf16 %v1607, %v1606
          %v1637 = vpack.c.bf16 %v1609, %v1608
          %v1638 = vpack.c.bf16 %v1611, %v1610
          %v1639 = vpack.c.bf16 %v1613, %v1612
          %v1640 = vpack.c.bf16 %v1615, %v1614
          %v1641 = vpack.c.bf16 %v1617, %v1616
          %v1642 = vpack.c.bf16 %v1619, %v1618
          %v1643 = vpack.c.bf16 %v1621, %v1620
          %v1644 = vpack.c.bf16 %v1623, %v1622
          %v1645 = vpack.c.bf16 %v1625, %v1624
          %v1646 = vpack.c.bf16 %v1627, %v1626
          %v1647 = vpack.c.bf16 %v1629, %v1628
          %v1648 = vpack.c.bf16 %v1631, %v1630
          %v1649 = vpack.c.bf16 %v1633, %v1632
          %v1666 = vunpack.c.l.b16 %v1634
          %v1667 = vunpack.c.h.b16 %v1634
          %v1668 = vunpack.c.l.b16 %v1635
          %v1669 = vunpack.c.h.b16 %v1635
          %v1670 = vunpack.c.l.b16 %v1636
          %v1671 = vunpack.c.h.b16 %v1636
          %v1672 = vunpack.c.l.b16 %v1637
          %v1673 = vunpack.c.h.b16 %v1637
          %v1674 = vunpack.c.l.b16 %v1638
          %v1675 = vunpack.c.h.b16 %v1638
          %v1676 = vunpack.c.l.b16 %v1639
          %v1677 = vunpack.c.h.b16 %v1639
          %v1678 = vunpack.c.l.b16 %v1640
          %v1679 = vunpack.c.h.b16 %v1640
          %v1680 = vunpack.c.l.b16 %v1641
          %v1681 = vunpack.c.h.b16 %v1641
          %v1682 = vunpack.c.l.b16 %v1642
          %v1683 = vunpack.c.h.b16 %v1642
          %v1684 = vunpack.c.l.b16 %v1643
          %v1685 = vunpack.c.h.b16 %v1643
          %v1686 = vunpack.c.l.b16 %v1644
          %v1687 = vunpack.c.h.b16 %v1644
          %v1688 = vunpack.c.l.b16 %v1645
          %v1689 = vunpack.c.h.b16 %v1645
          %v1690 = vunpack.c.l.b16 %v1646
          %v1691 = vunpack.c.h.b16 %v1646
          %v1692 = vunpack.c.l.b16 %v1647
          %v1693 = vunpack.c.h.b16 %v1647
          %v1694 = vunpack.c.l.b16 %v1648
          %v1695 = vunpack.c.h.b16 %v1648
          %v1696 = vunpack.c.l.b16 %v1649
          %v1697 = vunpack.c.h.b16 %v1649
          %v1698 = vpack.c.b16 %v1666, %v1666
          %v1699 = vpack.c.b16 %v1667, %v1667
          %v1700 = vpack.c.b16 %v1668, %v1668
          %v1701 = vpack.c.b16 %v1669, %v1669
          %v1702 = vpack.c.b16 %v1670, %v1670
          %v1703 = vpack.c.b16 %v1671, %v1671
          %v1704 = vpack.c.b16 %v1672, %v1672
          %v1705 = vpack.c.b16 %v1673, %v1673
          %v1706 = vpack.c.b16 %v1674, %v1674
          %v1707 = vpack.c.b16 %v1675, %v1675
          %v1708 = vpack.c.b16 %v1676, %v1676
          %v1709 = vpack.c.b16 %v1677, %v1677
          %v1710 = vpack.c.b16 %v1678, %v1678
          %v1711 = vpack.c.b16 %v1679, %v1679
          %v1712 = vpack.c.b16 %v1680, %v1680
          %v1713 = vpack.c.b16 %v1681, %v1681
          %v1714 = vpack.c.b16 %v1682, %v1682
          %v1715 = vpack.c.b16 %v1683, %v1683
          %v1716 = vpack.c.b16 %v1684, %v1684
          %v1717 = vpack.c.b16 %v1685, %v1685
          %v1718 = vpack.c.b16 %v1686, %v1686
          %v1719 = vpack.c.b16 %v1687, %v1687
          %v1720 = vpack.c.b16 %v1688, %v1688
          %v1721 = vpack.c.b16 %v1689, %v1689
          %v1722 = vpack.c.b16 %v1690, %v1690
          %v1723 = vpack.c.b16 %v1691, %v1691
          %v1724 = vpack.c.b16 %v1692, %v1692
          %v1725 = vpack.c.b16 %v1693, %v1693
          %v1726 = vpack.c.b16 %v1694, %v1694
          %v1727 = vpack.c.b16 %v1695, %v1695
          %v1728 = vpack.c.b16 %v1696, %v1696
          %v1729 = vpack.c.b16 %v1697, %v1697
          %vm1762 = vcmask 519168
          %1763 = vst.msk [vmem:[%s404] sm:$0xf] %vm1762, %v1698
          %1764 = vst.msk [vmem:[%s404 + $0x4] sm:$0xf] %vm1762, %v1699
          %1765 = vst.msk [vmem:[%s404 + $0x8] sm:$0xf] %vm1762, %v1700
          %1766 = vst.msk [vmem:[%s404 + $0xc] sm:$0xf] %vm1762, %v1701
          %1767 = vst.msk [vmem:[%s404 + $0x10] sm:$0xf] %vm1762, %v1702
          %1768 = vst.msk [vmem:[%s404 + $0x14] sm:$0xf] %vm1762, %v1703
          %1769 = vst.msk [vmem:[%s404 + $0x18] sm:$0xf] %vm1762, %v1704
          %1770 = vst.msk [vmem:[%s404 + $0x1c] sm:$0xf] %vm1762, %v1705
          %1771 = vst.msk [vmem:[%s404 + $0x20] sm:$0xf] %vm1762, %v1706
          %1772 = vst.msk [vmem:[%s404 + $0x24] sm:$0xf] %vm1762, %v1707
          %1773 = vst.msk [vmem:[%s404 + $0x28] sm:$0xf] %vm1762, %v1708
          %1774 = vst.msk [vmem:[%s404 + $0x2c] sm:$0xf] %vm1762, %v1709
          %1775 = vst.msk [vmem:[%s404 + $0x30] sm:$0xf] %vm1762, %v1710
          %1776 = vst.msk [vmem:[%s404 + $0x34] sm:$0xf] %vm1762, %v1711
          %1777 = vst.msk [vmem:[%s404 + $0x38] sm:$0xf] %vm1762, %v1712
          %1778 = vst.msk [vmem:[%s404 + $0x3c] sm:$0xf] %vm1762, %v1713
          %1779 = vst.msk [vmem:[%s404 + $0x40] sm:$0xf] %vm1762, %v1714
          %1780 = vst.msk [vmem:[%s404 + $0x44] sm:$0xf] %vm1762, %v1715
          %1781 = vst.msk [vmem:[%s404 + $0x48] sm:$0xf] %vm1762, %v1716
          %1782 = vst.msk [vmem:[%s404 + $0x4c] sm:$0xf] %vm1762, %v1717
          %1783 = vst.msk [vmem:[%s404 + $0x50] sm:$0xf] %vm1762, %v1718
          %1784 = vst.msk [vmem:[%s404 + $0x54] sm:$0xf] %vm1762, %v1719
          %1785 = vst.msk [vmem:[%s404 + $0x58] sm:$0xf] %vm1762, %v1720
          %1786 = vst.msk [vmem:[%s404 + $0x5c] sm:$0xf] %vm1762, %v1721
          %1787 = vst.msk [vmem:[%s404 + $0x60] sm:$0xf] %vm1762, %v1722
          %1788 = vst.msk [vmem:[%s404 + $0x64] sm:$0xf] %vm1762, %v1723
          %1789 = vst.msk [vmem:[%s404 + $0x68] sm:$0xf] %vm1762, %v1724
          %1790 = vst.msk [vmem:[%s404 + $0x6c] sm:$0xf] %vm1762, %v1725
          %1791 = vst.msk [vmem:[%s404 + $0x70] sm:$0xf] %vm1762, %v1726
          %1792 = vst.msk [vmem:[%s404 + $0x74] sm:$0xf] %vm1762, %v1727
          %1793 = vst.msk [vmem:[%s404 + $0x78] sm:$0xf] %vm1762, %v1728
          %1794 = vst.msk [vmem:[%s404 + $0x7c] sm:$0xf] %vm1762, %v1729
        $region56: #{tpu_custom_call.1} parent=43 // pred_fallthru
          _
        %s1795 = smul.u32 32, %s25
        %p1796 = scmp.lt.s32.totalorder %s1795, 63
        %s1797 = scalar_select %p1796, %s1795, 63
        %p1798 = scmp.lt.s32.totalorder %s26, 0
        %s1799 = scalar_select %p1798, %s26, 0
        %s1800 = sadd.s32 %s1799, %s1797
        %s1801 = smul.addr %s1800, 4
        %s1802 = scalar_lea.vmem %s6, %s1801
        // Predicated region
        $region57: #{tpu_custom_call.1} parent=43 // pred_check
          %p1803 = pneg %p219
        $region58: #{tpu_custom_call.1} parent=43 // pred_check_branch
          %1805 = sbr.rel (%p1803) target = $region60
        $region59: #{tpu_custom_call.1} parent=43 // pred_region
          %s1806 = smul.u32 32, %s25
        $region60: #{tpu_custom_call.1} parent=43 // pred_fallthru
          _
      $region44: #{tpu_custom_call.1} parent=5 // pred_fallthru
        _
      %p1807 = scmp.le.s32.totalorder 2, %s15
      // Predicated region
      $region61: #{tpu_custom_call.1} parent=5 // pred_check
        %p1808 = pneg %p1807
      $region62: #{tpu_custom_call.1} parent=5 // pred_check_branch
        %1810 = sbr.rel (%p1808) target = $region64
      $region63: #{tpu_custom_call.1} parent=5 // pred_region
        %s1811 = ssub.s32 %s15, 2
        // Predicated region
        $region65: #{tpu_custom_call.1} parent=63 // pred_check
          %p1812 = pneg %p225
        $region66: #{tpu_custom_call.1} parent=63 // pred_check_branch
          %1814 = sbr.rel (%p1812) target = $region68
        $region67: #{tpu_custom_call.1} parent=63 // pred_region
          %s1815 = smul.u32 32, %s28
          %p1816 = scmp.lt.s32.totalorder %s1815, 63
          %s1817 = scalar_select %p1816, %s1815, 63
          %p1818 = scmp.lt.s32.totalorder %s29, 0
          %s1819 = scalar_select %p1818, %s29, 0
          %s1820 = sadd.s32 %s1819, %s1817
          %s1821 = smul.addr %s1820, 4
          %s1822 = scalar_lea.vmem %s6, %s1821
        $region68: #{tpu_custom_call.1} parent=63 // pred_fallthru
          _
      $region64: #{tpu_custom_call.1} parent=5 // pred_fallthru
        _
    $region6: #{tpu_custom_call.1} parent=1 // loop_footer
      %s19 = sadd.s32 1, %s15
    $region7: #{tpu_custom_call.1} parent=1 // loop_footer_branch
      %14 = sbr.rel target = $region3
    $region8: #{tpu_custom_call.1} parent=1 // loop_exit
      _
    %1823 = vsyncpa [#allocation4], 1
    %s1824 = scalar_lea.sflag [#allocation4], 1
    %1825 = vsyncpa %s1824, 1

</llo_original>
